<compile_context>
chip_gen: v7x
topology: tpu7x:2x2x1
jax: 0.10.0
libtpu: 0.0.40
codegen_flags: <defaults>
</compile_context>

<pallas_src>
import functools

import jax
import jax.numpy as jnp
from jax.experimental import pallas as pl
from jax.experimental.pallas import tpu as pltpu


# ---------------------------------------------------------------------------
# Fused kernel: one batch element per grid step.
# ---------------------------------------------------------------------------
def _fused_attn_kernel(x_ref, wqkv_ref, wproj_ref, bproj_ref,
                       bias_ref, inv_ref, dq_ref, att_inv_ref, att_dq_ref,
                       o_ref, *, H, Dh, qn_a, qp_a, qn_t, qp_t):
    """
    x_ref     : (1, N, C_in) f32   input rows of this batch element
    wqkv_ref  : (C_in, 3C)   bf16  fake-quantized qkv weight (transposed, no bias)
    wproj_ref : (C, C_in)    bf16  fake-quantized proj weight (transposed)
    bproj_ref : (1, C_in)    f32   proj bias
    bias_ref  : (1, 3C)      f32   [moveq | movek | 0] per-channel LearnableBias
    inv_ref   : (1, 3C)      f32   1/alpha per channel for ActQ(q,k,v)
    dq_ref    : (1, 3C)      f32   dequant step per channel (q third has `scale` folded)
    att_*_ref : (H,)  SMEM   f32   1/alpha and alpha for ActQ(attn), per head
    o_ref     : (1, N, C_in) f32   output rows
    """
    C = H * Dh

    # ---- qkv = LinearQ(x) (bias=False); bf16 MXU operands, f32 accumulation ----
    x = x_ref[0].astype(jnp.bfloat16)                                      # (N, C_in)
    qkv = jnp.dot(x, wqkv_ref[...], preferred_element_type=jnp.float32)    # (N, 3C)

    # ---- LearnableBias(q,k) + ActQ(q), ActQ(k), ActQ(v): one lane-dense pass.
    # Module order is quantize-then-scale, so `scale` is folded into the q
    # dequant row: clip(round(x/a))*a*scale == ActQ(x)*scale.  No divides.
    q_int = jnp.clip(jnp.round((qkv + bias_ref[...]) * inv_ref[...]), qn_a, qp_a)
    qkv_q = q_int * dq_ref[...]                                            # (N, 3C) f32

    # ---- per-head attention; H is small and static -> unrolled, all heads in
    # this single grid step (no per-head grid/DMA overhead).
    outs = []
    for h in range(H):
        lo = h * Dh
        qh = qkv_q[:, lo:lo + Dh].astype(jnp.bfloat16)                 # (N, Dh), scale folded
        kh = qkv_q[:, C + lo:C + lo + Dh].astype(jnp.bfloat16)         # (N, Dh)
        vh = qkv_q[:, 2 * C + lo:2 * C + lo + Dh].astype(jnp.bfloat16)  # (N, Dh)

        # scores: contract the head dim of both operands (no materialized k^T).
        s = jax.lax.dot_general(qh, kh, (((1,), (1,)), ((), ())),
                                preferred_element_type=jnp.float32)     # (N, N)
        s = s - jnp.max(s, axis=-1, keepdims=True)                      # softmax(-1)
        p = jnp.exp(s)
        p = p * pl.reciprocal(jnp.sum(p, axis=-1, keepdims=True), approx=True)

        # attn_drop(p=0.0) is identity; ActQ(attn) on an unsigned 8-bit grid
        # (softmax probabilities are non-negative).
        # TODO(synk): confirm exact ActQ sign handling / learned alpha semantics.
        p = jnp.clip(jnp.round(p * att_inv_ref[h]), qn_t, qp_t) * att_dq_ref[h]

        outs.append(jnp.dot(p.astype(jnp.bfloat16), vh,
                            preferred_element_type=jnp.float32))        # (N, Dh)

    # (attn @ v).transpose(1, 2).reshape(B, N, C): per-row channel order is
    # [head][Dh] -> lane-concatenation of the per-head outputs.
    attn_out = jnp.concatenate(outs, axis=-1).astype(jnp.bfloat16)      # (N, C)

    # ---- proj = LinearQ(attn_out) + bias; proj_drop(p=0.0) is identity ----
    y = jnp.dot(attn_out, wproj_ref[...], preferred_element_type=jnp.float32)
    o_ref[0] = y + bproj_ref[...]


# ---------------------------------------------------------------------------
# LSQ-style weight fake-quant (per output channel), JAX glue (weights only).
# ---------------------------------------------------------------------------
def quantize_weight(w, nbits):
    """w: (out_features, in_features) torch-layout weight. Returns fake-quant weight."""
    qn, qp = -(2 ** (nbits - 1)), 2 ** (nbits - 1) - 1
    alpha = 2.0 * jnp.mean(jnp.abs(w), axis=1, keepdims=True) / jnp.sqrt(float(qp))
    alpha = jnp.maximum(alpha, 1e-8)
    return jnp.clip(jnp.round(w / alpha), qn, qp) * alpha


# ---------------------------------------------------------------------------
# Full forward pass of quantized_TimesAttention3D (single fused pallas_call).
# ---------------------------------------------------------------------------
def quantized_times_attention3d(x, params, *, num_heads, wa_bits_w=4, att_bits_w=8):
    B, N, C_in = x.shape
    C = C_in // 2
    H = num_heads
    Dh = C // H
    # Module: head_dim = dim // num_heads (the FULL dim), even though q/k/v
    # heads actually carry (dim//2)//num_heads channels.  Keep that semantics.
    scale = float(C_in // H) ** (-0.5)

    # LinearQ weights: fake-quantize then cast to bf16 for the MXU.
    # TODO(synk): exact LinearQ uses a learned alpha; this recomputes it from |w|.
    wqkv_t = quantize_weight(params["w_qkv"], wa_bits_w).T.astype(jnp.bfloat16)    # (C_in, 3C)
    wproj_t = quantize_weight(params["w_proj"], wa_bits_w).T.astype(jnp.bfloat16)  # (C, C_in)
    bproj = params["b_proj"].astype(jnp.float32).reshape(1, C_in)

    # Per-channel rows aligned with the (N, 3C) = [q | k | v] slab; channel order
    # inside each third is [head][Dh], matching reshape(B,N,3,H,Dh) of the module.
    rep = lambda a: jnp.repeat(a.astype(jnp.float32), Dh)
    qa, ka, va = params["q_alpha"], params["k_alpha"], params["v_alpha"]
    bias_row = jnp.concatenate(
        [rep(params["moveq_bias"]), rep(params["movek_bias"]),
         jnp.zeros((C,), jnp.float32)]).reshape(1, 3 * C)
    inv_row = jnp.concatenate([rep(1.0 / qa), rep(1.0 / ka), rep(1.0 / va)]).reshape(1, 3 * C)
    dq_row = jnp.concatenate([rep(qa * scale), rep(ka), rep(va)]).reshape(1, 3 * C)

    att_inv = (1.0 / params["attn_alpha"]).astype(jnp.float32)   # (H,)
    att_dq = params["attn_alpha"].astype(jnp.float32)            # (H,)

    qn_a, qp_a = float(-(2 ** (wa_bits_w - 1))), float(2 ** (wa_bits_w - 1) - 1)
    qn_t, qp_t = 0.0, float(2 ** att_bits_w - 1)   # unsigned grid for softmax probs

    kernel = functools.partial(_fused_attn_kernel, H=H, Dh=Dh,
                               qn_a=qn_a, qp_a=qp_a, qn_t=qn_t, qp_t=qp_t)

    smem = pl.BlockSpec(memory_space=pltpu.MemorySpace.SMEM)

    grid_spec = pltpu.PrefetchScalarGridSpec(
        num_scalar_prefetch=0,
        grid=(B,),
        in_specs=[
            pl.BlockSpec((1, N, C_in), lambda b: (b, 0, 0)),   # x rows of batch b
            pl.BlockSpec((C_in, 3 * C), lambda b: (0, 0)),     # qkv weight (resident)
            pl.BlockSpec((C, C_in), lambda b: (0, 0)),         # proj weight (resident)
            pl.BlockSpec((1, C_in), lambda b: (0, 0)),         # proj bias
            pl.BlockSpec((1, 3 * C), lambda b: (0, 0)),        # moveq/movek row
            pl.BlockSpec((1, 3 * C), lambda b: (0, 0)),        # 1/alpha row
            pl.BlockSpec((1, 3 * C), lambda b: (0, 0)),        # dequant row (scale folded)
            smem,                                              # attn 1/alpha per head
            smem,                                              # attn alpha per head
        ],
        out_specs=pl.BlockSpec((1, N, C_in), lambda b: (b, 0, 0)),
    )

    return pl.pallas_call(
        kernel,
        out_shape=jax.ShapeDtypeStruct((B, N, C_in), jnp.float32),
        grid_spec=grid_spec,
        compiler_params=pltpu.CompilerParams(dimension_semantics=("parallel",)),
    )(x, wqkv_t, wproj_t, bproj, bias_row, inv_row, dq_row, att_inv, att_dq)


# ---------------------------------------------------------------------------
# Pure-JAX reference (mirrors the same quantization approximations/casts).
# ---------------------------------------------------------------------------
def reference_forward(x, params, *, num_heads, wa_bits_w=4, att_bits_w=8):
    B, N, C_in = x.shape
    C = C_in // 2
    H = num_heads
    Dh = C // H
    scale = float(C_in // H) ** (-0.5)

    wqkv = quantize_weight(params["w_qkv"], wa_bits_w).astype(jnp.bfloat16)   # (3C, C_in)
    wproj = quantize_weight(params["w_proj"], wa_bits_w).astype(jnp.bfloat16)  # (C_in, C)
    qn_a, qp_a = -(2 ** (wa_bits_w - 1)), 2 ** (wa_bits_w - 1) - 1
    qn_t, qp_t = 0.0, 2 ** att_bits_w - 1

    def actq(t, alpha, qn, qp):
        a = alpha.reshape(1, H, 1, 1).astype(jnp.float32)
        return jnp.clip(jnp.round(t * (1.0 / a)), qn, qp) * a

    qkv = jnp.einsum('bnc,dc->bnd', x.astype(jnp.bfloat16), wqkv,
                     preferred_element_type=jnp.float32)                  # (B, N, 3C)
    qkv = qkv.reshape(B, N, 3, H, Dh).transpose(2, 0, 3, 1, 4)            # (3, B, H, N, Dh)
    q, k, v = qkv[0], qkv[1], qkv[2]
    q = q + params["moveq_bias"].reshape(1, H, 1, 1)
    k = k + params["movek_bias"].reshape(1, H, 1, 1)
    q = actq(q, params["q_alpha"], qn_a, qp_a)
    k = actq(k, params["k_alpha"], qn_a, qp_a)
    v = actq(v, params["v_alpha"], qn_a, qp_a)
    q = q * scale
    attn = jnp.einsum('bhnd,bhmd->bhnm', q.astype(jnp.bfloat16), k.astype(jnp.bfloat16),
                      preferred_element_type=jnp.float32)
    attn = jax.nn.softmax(attn, axis=-1)
    attn = actq(attn, params["attn_alpha"], qn_t, qp_t)
    out = jnp.einsum('bhnm,bhmd->bhnd', attn.astype(jnp.bfloat16), v.astype(jnp.bfloat16),
                     preferred_element_type=jnp.float32)
    out = out.transpose(0, 2, 1, 3).reshape(B, N, C)
    y = jnp.einsum('bnc,dc->bnd', out.astype(jnp.bfloat16), wproj,
                   preferred_element_type=jnp.float32)
    return y + params["b_proj"].reshape(1, 1, C_in)


# ---------------------------------------------------------------------------
# Driver
# ---------------------------------------------------------------------------
if __name__ == "__main__":
    B, N, dim, H = 2, 16, 64, 4          # C = dim//2 = 32, Dh = 8
    C = dim // 2

    key = jax.random.PRNGKey(0)
    ks = jax.random.split(key, 7)

    params = {
        # torch-layout weights: (out_features, in_features)
        "w_qkv":  (jax.random.normal(ks[0], (3 * C, dim)) * 0.02).astype(jnp.float32),
        "w_proj": (jax.random.normal(ks[1], (dim, C)) * 0.02).astype(jnp.float32),
        "b_proj": (jax.random.normal(ks[2], (dim,)) * 0.02).astype(jnp.float32),
        # LearnableBias (1, H, 1, 1) -> stored flat per head
        "moveq_bias": (jax.random.normal(ks[3], (H,)) * 0.1).astype(jnp.float32),
        "movek_bias": (jax.random.normal(ks[4], (H,)) * 0.1).astype(jnp.float32),
        # ActQ learned step sizes (per head), deterministic
        "q_alpha":    (0.05 * (1.0 + 0.1 * jnp.arange(H))).astype(jnp.float32),
        "k_alpha":    (0.05 * (1.0 + 0.1 * jnp.arange(H))).astype(jnp.float32),
        "v_alpha":    (0.05 * (1.0 + 0.1 * jnp.arange(H))).astype(jnp.float32),
        "attn_alpha": (jnp.full((H,), 1.0 / 255.0)).astype(jnp.float32),
    }

    x = jax.random.normal(ks[5], (B, N, dim), dtype=jnp.float32)

    fwd = jax.jit(functools.partial(quantized_times_attention3d,
                                    num_heads=H, wa_bits_w=4, att_bits_w=8))
    y = fwd(x, params)
    jax.block_until_ready(y)

    assert y.shape == (B, N, dim), y.shape
    assert bool(jnp.isfinite(y).all())

    y_ref = reference_forward(x, params, num_heads=H, wa_bits_w=4, att_bits_w=8)
    jax.block_until_ready(y_ref)
    max_err = float(jnp.max(jnp.abs(y - y_ref)))
    assert max_err < 1e-2, f"max abs error vs reference: {max_err}"

    print("KERNEL_OK")
</pallas_src>

<mosaic_0001>
module attributes {stable_mosaic.version = 11 : i64} {
  func.func @_fused_attn_kernel(%arg0: i32, %arg1: memref<1x16x64xf32, #tpu.memory_space<vmem>>, %arg2: memref<64x96xbf16, #tpu.memory_space<vmem>>, %arg3: memref<32x64xbf16, #tpu.memory_space<vmem>>, %arg4: memref<1x64xf32, #tpu.memory_space<vmem>>, %arg5: memref<1x96xf32, #tpu.memory_space<vmem>>, %arg6: memref<1x96xf32, #tpu.memory_space<vmem>>, %arg7: memref<1x96xf32, #tpu.memory_space<vmem>>, %arg8: memref<4xf32, #tpu.memory_space<smem>>, %arg9: memref<4xf32, #tpu.memory_space<smem>>, %arg10: memref<1x16x64xf32, #tpu.memory_space<vmem>>) attributes {dimension_semantics = [#tpu.dimension_semantics<parallel>], iteration_bounds = array<i64: 2>, scalar_prefetch = 0 : i64, scratch_operands = 0 : i64, tpu.core_type = #tpu.core_type<tc>, window_params = [{transform_indices = @transform_0, window_bounds = array<i64: 1, 16, 64>}, {pipeline_mode = #tpu.pipeline_mode<synchronous>, transform_indices = @transform_1, window_bounds = array<i64: 64, 96>}, {pipeline_mode = #tpu.pipeline_mode<synchronous>, transform_indices = @transform_2, window_bounds = array<i64: 32, 64>}, {pipeline_mode = #tpu.pipeline_mode<synchronous>, transform_indices = @transform_3, window_bounds = array<i64: 1, 64>}, {pipeline_mode = #tpu.pipeline_mode<synchronous>, transform_indices = @transform_4, window_bounds = array<i64: 1, 96>}, {pipeline_mode = #tpu.pipeline_mode<synchronous>, transform_indices = @transform_5, window_bounds = array<i64: 1, 96>}, {pipeline_mode = #tpu.pipeline_mode<synchronous>, transform_indices = @transform_6, window_bounds = array<i64: 1, 96>}, {transform_indices = @transform_7, window_bounds = array<i64: 4>}, {transform_indices = @transform_8, window_bounds = array<i64: 4>}, {transform_indices = @transform_9, window_bounds = array<i64: 1, 16, 64>}]} {
    %c0 = arith.constant 0 : index
    %c0_0 = arith.constant 0 : index
    %c0_1 = arith.constant 0 : index
    %0 = vector.load %arg1[%c0, %c0_0, %c0_1] : memref<1x16x64xf32, #tpu.memory_space<vmem>>, vector<1x16x64xf32>
    %1 = vector.shape_cast %0 : vector<1x16x64xf32> to vector<16x64xf32>
    %2 = arith.truncf %1 : vector<16x64xf32> to vector<16x64xbf16>
    %c0_2 = arith.constant 0 : index
    %c0_3 = arith.constant 0 : index
    %3 = vector.load %arg2[%c0_2, %c0_3] : memref<64x96xbf16, #tpu.memory_space<vmem>>, vector<64x96xbf16>
    %cst = arith.constant dense<0.000000e+00> : vector<16x96xf32>
    %4 = tpu.matmul %2, %3, %cst {dimension_numbers = #tpu.dot_dimension_numbers<[1], [0], [0], [1], [0, 0, 1, 1], [], []>} : vector<16x64xbf16>, vector<64x96xbf16>, vector<16x96xf32> -> vector<16x96xf32>
    %c0_4 = arith.constant 0 : index
    %c0_5 = arith.constant 0 : index
    %5 = vector.load %arg5[%c0_4, %c0_5] : memref<1x96xf32, #tpu.memory_space<vmem>>, vector<1x96xf32>
    %6 = vector.broadcast %5 : vector<1x96xf32> to vector<16x96xf32>
    %7 = arith.addf %4, %6 : vector<16x96xf32>
    %c0_6 = arith.constant 0 : index
    %c0_7 = arith.constant 0 : index
    %8 = vector.load %arg6[%c0_6, %c0_7] : memref<1x96xf32, #tpu.memory_space<vmem>>, vector<1x96xf32>
    %9 = vector.broadcast %8 : vector<1x96xf32> to vector<16x96xf32>
    %10 = arith.mulf %7, %9 : vector<16x96xf32>
    %11 = math.roundeven %10 : vector<16x96xf32>
    %cst_8 = arith.constant -8.000000e+00 : f32
    %cst_9 = arith.constant 7.000000e+00 : f32
    %12 = vector.broadcast %cst_8 : f32 to vector<16x96xf32>
    %13 = arith.maximumf %12, %11 : vector<16x96xf32>
    %14 = vector.broadcast %cst_9 : f32 to vector<16x96xf32>
    %15 = arith.minimumf %14, %13 : vector<16x96xf32>
    %c0_10 = arith.constant 0 : index
    %c0_11 = arith.constant 0 : index
    %16 = vector.load %arg7[%c0_10, %c0_11] : memref<1x96xf32, #tpu.memory_space<vmem>>, vector<1x96xf32>
    %17 = vector.broadcast %16 : vector<1x96xf32> to vector<16x96xf32>
    %18 = arith.mulf %15, %17 : vector<16x96xf32>
    %19 = vector.extract_strided_slice %18 {offsets = [0, 0], sizes = [16, 8], strides = [1, 1]} : vector<16x96xf32> to vector<16x8xf32>
    %20 = arith.truncf %19 : vector<16x8xf32> to vector<16x8xbf16>
    %21 = vector.extract_strided_slice %18 {offsets = [0, 32], sizes = [16, 8], strides = [1, 1]} : vector<16x96xf32> to vector<16x8xf32>
    %22 = arith.truncf %21 : vector<16x8xf32> to vector<16x8xbf16>
    %23 = vector.extract_strided_slice %18 {offsets = [0, 64], sizes = [16, 8], strides = [1, 1]} : vector<16x96xf32> to vector<16x8xf32>
    %24 = arith.truncf %23 : vector<16x8xf32> to vector<16x8xbf16>
    %cst_12 = arith.constant dense<0.000000e+00> : vector<16x16xf32>
    %25 = tpu.matmul %20, %22, %cst_12 {dimension_numbers = #tpu.dot_dimension_numbers<[1], [1], [0], [0], [0, 0, 1, 0], [], []>} : vector<16x8xbf16>, vector<16x8xbf16>, vector<16x16xf32> -> vector<16x16xf32>
    %cst_13 = arith.constant dense<0xFF800000> : vector<16xf32>
    %26 = vector.multi_reduction <maximumf>, %25, %cst_13 [1] : vector<16x16xf32> to vector<16xf32>
    %27 = vector.shape_cast %26 : vector<16xf32> to vector<16x1xf32>
    %28 = vector.broadcast %27 : vector<16x1xf32> to vector<16x16xf32>
    %29 = arith.subf %25, %28 : vector<16x16xf32>
    %30 = math.exp %29 : vector<16x16xf32>
    %cst_14 = arith.constant dense<0.000000e+00> : vector<16xf32>
    %31 = vector.multi_reduction <add>, %30, %cst_14 [1] : vector<16x16xf32> to vector<16xf32>
    %32 = vector.shape_cast %31 : vector<16xf32> to vector<16x1xf32>
    %33 = tpu.reciprocal %32 {approx = true} : vector<16x1xf32> -> vector<16x1xf32>
    %34 = vector.broadcast %33 : vector<16x1xf32> to vector<16x16xf32>
    %35 = arith.mulf %30, %34 : vector<16x16xf32>
    %c0_15 = arith.constant 0 : index
    %36 = memref.load %arg8[%c0_15] : memref<4xf32, #tpu.memory_space<smem>>
    %37 = vector.broadcast %36 : f32 to vector<16x16xf32>
    %38 = arith.mulf %35, %37 : vector<16x16xf32>
    %39 = math.roundeven %38 : vector<16x16xf32>
    %cst_16 = arith.constant 0.000000e+00 : f32
    %cst_17 = arith.constant 2.550000e+02 : f32
    %40 = vector.broadcast %cst_16 : f32 to vector<16x16xf32>
    %41 = arith.maximumf %40, %39 : vector<16x16xf32>
    %42 = vector.broadcast %cst_17 : f32 to vector<16x16xf32>
    %43 = arith.minimumf %42, %41 : vector<16x16xf32>
    %c0_18 = arith.constant 0 : index
    %44 = memref.load %arg9[%c0_18] : memref<4xf32, #tpu.memory_space<smem>>
    %45 = vector.broadcast %44 : f32 to vector<16x16xf32>
    %46 = arith.mulf %43, %45 : vector<16x16xf32>
    %47 = arith.truncf %46 : vector<16x16xf32> to vector<16x16xbf16>
    %cst_19 = arith.constant dense<0.000000e+00> : vector<16x8xf32>
    %48 = tpu.matmul %47, %24, %cst_19 {dimension_numbers = #tpu.dot_dimension_numbers<[1], [0], [0], [1], [0, 0, 1, 1], [], []>} : vector<16x16xbf16>, vector<16x8xbf16>, vector<16x8xf32> -> vector<16x8xf32>
    %49 = vector.extract_strided_slice %18 {offsets = [0, 8], sizes = [16, 8], strides = [1, 1]} : vector<16x96xf32> to vector<16x8xf32>
    %50 = arith.truncf %49 : vector<16x8xf32> to vector<16x8xbf16>
    %51 = vector.extract_strided_slice %18 {offsets = [0, 40], sizes = [16, 8], strides = [1, 1]} : vector<16x96xf32> to vector<16x8xf32>
    %52 = arith.truncf %51 : vector<16x8xf32> to vector<16x8xbf16>
    %53 = vector.extract_strided_slice %18 {offsets = [0, 72], sizes = [16, 8], strides = [1, 1]} : vector<16x96xf32> to vector<16x8xf32>
    %54 = arith.truncf %53 : vector<16x8xf32> to vector<16x8xbf16>
    %cst_20 = arith.constant dense<0.000000e+00> : vector<16x16xf32>
    %55 = tpu.matmul %50, %52, %cst_20 {dimension_numbers = #tpu.dot_dimension_numbers<[1], [1], [0], [0], [0, 0, 1, 0], [], []>} : vector<16x8xbf16>, vector<16x8xbf16>, vector<16x16xf32> -> vector<16x16xf32>
    %cst_21 = arith.constant dense<0xFF800000> : vector<16xf32>
    %56 = vector.multi_reduction <maximumf>, %55, %cst_21 [1] : vector<16x16xf32> to vector<16xf32>
    %57 = vector.shape_cast %56 : vector<16xf32> to vector<16x1xf32>
    %58 = vector.broadcast %57 : vector<16x1xf32> to vector<16x16xf32>
    %59 = arith.subf %55, %58 : vector<16x16xf32>
    %60 = math.exp %59 : vector<16x16xf32>
    %cst_22 = arith.constant dense<0.000000e+00> : vector<16xf32>
    %61 = vector.multi_reduction <add>, %60, %cst_22 [1] : vector<16x16xf32> to vector<16xf32>
    %62 = vector.shape_cast %61 : vector<16xf32> to vector<16x1xf32>
    %63 = tpu.reciprocal %62 {approx = true} : vector<16x1xf32> -> vector<16x1xf32>
    %64 = vector.broadcast %63 : vector<16x1xf32> to vector<16x16xf32>
    %65 = arith.mulf %60, %64 : vector<16x16xf32>
    %c1 = arith.constant 1 : index
    %66 = memref.load %arg8[%c1] : memref<4xf32, #tpu.memory_space<smem>>
    %67 = vector.broadcast %66 : f32 to vector<16x16xf32>
    %68 = arith.mulf %65, %67 : vector<16x16xf32>
    %69 = math.roundeven %68 : vector<16x16xf32>
    %cst_23 = arith.constant 0.000000e+00 : f32
    %cst_24 = arith.constant 2.550000e+02 : f32
    %70 = vector.broadcast %cst_23 : f32 to vector<16x16xf32>
    %71 = arith.maximumf %70, %69 : vector<16x16xf32>
    %72 = vector.broadcast %cst_24 : f32 to vector<16x16xf32>
    %73 = arith.minimumf %72, %71 : vector<16x16xf32>
    %c1_25 = arith.constant 1 : index
    %74 = memref.load %arg9[%c1_25] : memref<4xf32, #tpu.memory_space<smem>>
    %75 = vector.broadcast %74 : f32 to vector<16x16xf32>
    %76 = arith.mulf %73, %75 : vector<16x16xf32>
    %77 = arith.truncf %76 : vector<16x16xf32> to vector<16x16xbf16>
    %cst_26 = arith.constant dense<0.000000e+00> : vector<16x8xf32>
    %78 = tpu.matmul %77, %54, %cst_26 {dimension_numbers = #tpu.dot_dimension_numbers<[1], [0], [0], [1], [0, 0, 1, 1], [], []>} : vector<16x16xbf16>, vector<16x8xbf16>, vector<16x8xf32> -> vector<16x8xf32>
    %79 = vector.extract_strided_slice %18 {offsets = [0, 16], sizes = [16, 8], strides = [1, 1]} : vector<16x96xf32> to vector<16x8xf32>
    %80 = arith.truncf %79 : vector<16x8xf32> to vector<16x8xbf16>
    %81 = vector.extract_strided_slice %18 {offsets = [0, 48], sizes = [16, 8], strides = [1, 1]} : vector<16x96xf32> to vector<16x8xf32>
    %82 = arith.truncf %81 : vector<16x8xf32> to vector<16x8xbf16>
    %83 = vector.extract_strided_slice %18 {offsets = [0, 80], sizes = [16, 8], strides = [1, 1]} : vector<16x96xf32> to vector<16x8xf32>
    %84 = arith.truncf %83 : vector<16x8xf32> to vector<16x8xbf16>
    %cst_27 = arith.constant dense<0.000000e+00> : vector<16x16xf32>
    %85 = tpu.matmul %80, %82, %cst_27 {dimension_numbers = #tpu.dot_dimension_numbers<[1], [1], [0], [0], [0, 0, 1, 0], [], []>} : vector<16x8xbf16>, vector<16x8xbf16>, vector<16x16xf32> -> vector<16x16xf32>
    %cst_28 = arith.constant dense<0xFF800000> : vector<16xf32>
    %86 = vector.multi_reduction <maximumf>, %85, %cst_28 [1] : vector<16x16xf32> to vector<16xf32>
    %87 = vector.shape_cast %86 : vector<16xf32> to vector<16x1xf32>
    %88 = vector.broadcast %87 : vector<16x1xf32> to vector<16x16xf32>
    %89 = arith.subf %85, %88 : vector<16x16xf32>
    %90 = math.exp %89 : vector<16x16xf32>
    %cst_29 = arith.constant dense<0.000000e+00> : vector<16xf32>
    %91 = vector.multi_reduction <add>, %90, %cst_29 [1] : vector<16x16xf32> to vector<16xf32>
    %92 = vector.shape_cast %91 : vector<16xf32> to vector<16x1xf32>
    %93 = tpu.reciprocal %92 {approx = true} : vector<16x1xf32> -> vector<16x1xf32>
    %94 = vector.broadcast %93 : vector<16x1xf32> to vector<16x16xf32>
    %95 = arith.mulf %90, %94 : vector<16x16xf32>
    %c2 = arith.constant 2 : index
    %96 = memref.load %arg8[%c2] : memref<4xf32, #tpu.memory_space<smem>>
    %97 = vector.broadcast %96 : f32 to vector<16x16xf32>
    %98 = arith.mulf %95, %97 : vector<16x16xf32>
    %99 = math.roundeven %98 : vector<16x16xf32>
    %cst_30 = arith.constant 0.000000e+00 : f32
    %cst_31 = arith.constant 2.550000e+02 : f32
    %100 = vector.broadcast %cst_30 : f32 to vector<16x16xf32>
    %101 = arith.maximumf %100, %99 : vector<16x16xf32>
    %102 = vector.broadcast %cst_31 : f32 to vector<16x16xf32>
    %103 = arith.minimumf %102, %101 : vector<16x16xf32>
    %c2_32 = arith.constant 2 : index
    %104 = memref.load %arg9[%c2_32] : memref<4xf32, #tpu.memory_space<smem>>
    %105 = vector.broadcast %104 : f32 to vector<16x16xf32>
    %106 = arith.mulf %103, %105 : vector<16x16xf32>
    %107 = arith.truncf %106 : vector<16x16xf32> to vector<16x16xbf16>
    %cst_33 = arith.constant dense<0.000000e+00> : vector<16x8xf32>
    %108 = tpu.matmul %107, %84, %cst_33 {dimension_numbers = #tpu.dot_dimension_numbers<[1], [0], [0], [1], [0, 0, 1, 1], [], []>} : vector<16x16xbf16>, vector<16x8xbf16>, vector<16x8xf32> -> vector<16x8xf32>
    %109 = vector.extract_strided_slice %18 {offsets = [0, 24], sizes = [16, 8], strides = [1, 1]} : vector<16x96xf32> to vector<16x8xf32>
    %110 = arith.truncf %109 : vector<16x8xf32> to vector<16x8xbf16>
    %111 = vector.extract_strided_slice %18 {offsets = [0, 56], sizes = [16, 8], strides = [1, 1]} : vector<16x96xf32> to vector<16x8xf32>
    %112 = arith.truncf %111 : vector<16x8xf32> to vector<16x8xbf16>
    %113 = vector.extract_strided_slice %18 {offsets = [0, 88], sizes = [16, 8], strides = [1, 1]} : vector<16x96xf32> to vector<16x8xf32>
    %114 = arith.truncf %113 : vector<16x8xf32> to vector<16x8xbf16>
    %cst_34 = arith.constant dense<0.000000e+00> : vector<16x16xf32>
    %115 = tpu.matmul %110, %112, %cst_34 {dimension_numbers = #tpu.dot_dimension_numbers<[1], [1], [0], [0], [0, 0, 1, 0], [], []>} : vector<16x8xbf16>, vector<16x8xbf16>, vector<16x16xf32> -> vector<16x16xf32>
    %cst_35 = arith.constant dense<0xFF800000> : vector<16xf32>
    %116 = vector.multi_reduction <maximumf>, %115, %cst_35 [1] : vector<16x16xf32> to vector<16xf32>
    %117 = vector.shape_cast %116 : vector<16xf32> to vector<16x1xf32>
    %118 = vector.broadcast %117 : vector<16x1xf32> to vector<16x16xf32>
    %119 = arith.subf %115, %118 : vector<16x16xf32>
    %120 = math.exp %119 : vector<16x16xf32>
    %cst_36 = arith.constant dense<0.000000e+00> : vector<16xf32>
    %121 = vector.multi_reduction <add>, %120, %cst_36 [1] : vector<16x16xf32> to vector<16xf32>
    %122 = vector.shape_cast %121 : vector<16xf32> to vector<16x1xf32>
    %123 = tpu.reciprocal %122 {approx = true} : vector<16x1xf32> -> vector<16x1xf32>
    %124 = vector.broadcast %123 : vector<16x1xf32> to vector<16x16xf32>
    %125 = arith.mulf %120, %124 : vector<16x16xf32>
    %c3 = arith.constant 3 : index
    %126 = memref.load %arg8[%c3] : memref<4xf32, #tpu.memory_space<smem>>
    %127 = vector.broadcast %126 : f32 to vector<16x16xf32>
    %128 = arith.mulf %125, %127 : vector<16x16xf32>
    %129 = math.roundeven %128 : vector<16x16xf32>
    %cst_37 = arith.constant 0.000000e+00 : f32
    %cst_38 = arith.constant 2.550000e+02 : f32
    %130 = vector.broadcast %cst_37 : f32 to vector<16x16xf32>
    %131 = arith.maximumf %130, %129 : vector<16x16xf32>
    %132 = vector.broadcast %cst_38 : f32 to vector<16x16xf32>
    %133 = arith.minimumf %132, %131 : vector<16x16xf32>
    %c3_39 = arith.constant 3 : index
    %134 = memref.load %arg9[%c3_39] : memref<4xf32, #tpu.memory_space<smem>>
    %135 = vector.broadcast %134 : f32 to vector<16x16xf32>
    %136 = arith.mulf %133, %135 : vector<16x16xf32>
    %137 = arith.truncf %136 : vector<16x16xf32> to vector<16x16xbf16>
    %cst_40 = arith.constant dense<0.000000e+00> : vector<16x8xf32>
    %138 = tpu.matmul %137, %114, %cst_40 {dimension_numbers = #tpu.dot_dimension_numbers<[1], [0], [0], [1], [0, 0, 1, 1], [], []>} : vector<16x16xbf16>, vector<16x8xbf16>, vector<16x8xf32> -> vector<16x8xf32>
    %139 = tpu.concatenate %48, %78, %108, %138 in 1 : vector<16x8xf32>, vector<16x8xf32>, vector<16x8xf32>, vector<16x8xf32> -> vector<16x32xf32>
    %140 = arith.truncf %139 : vector<16x32xf32> to vector<16x32xbf16>
    %c0_41 = arith.constant 0 : index
    %c0_42 = arith.constant 0 : index
    %141 = vector.load %arg3[%c0_41, %c0_42] : memref<32x64xbf16, #tpu.memory_space<vmem>>, vector<32x64xbf16>
    %cst_43 = arith.constant dense<0.000000e+00> : vector<16x64xf32>
    %142 = tpu.matmul %140, %141, %cst_43 {dimension_numbers = #tpu.dot_dimension_numbers<[1], [0], [0], [1], [0, 0, 1, 1], [], []>} : vector<16x32xbf16>, vector<32x64xbf16>, vector<16x64xf32> -> vector<16x64xf32>
    %c0_44 = arith.constant 0 : index
    %c0_45 = arith.constant 0 : index
    %143 = vector.load %arg4[%c0_44, %c0_45] : memref<1x64xf32, #tpu.memory_space<vmem>>, vector<1x64xf32>
    %144 = vector.broadcast %143 : vector<1x64xf32> to vector<16x64xf32>
    %145 = arith.addf %142, %144 : vector<16x64xf32>
    %c0_46 = arith.constant 0 : index
    %c0_47 = arith.constant 0 : index
    %c0_48 = arith.constant 0 : index
    %146 = vector.load %arg10[%c0_46, %c0_47, %c0_48] : memref<1x16x64xf32, #tpu.memory_space<vmem>>, vector<1x16x64xf32>
    %147 = vector.shape_cast %146 : vector<1x16x64xf32> to vector<16x64xf32>
    %148 = vector.shape_cast %145 : vector<16x64xf32> to vector<1x16x64xf32>
    tpu.vector_store %arg10[%c0_46, %c0_47, %c0_48], %148 {strides = array<i32>} : memref<1x16x64xf32, #tpu.memory_space<vmem>>, vector<1x16x64xf32>,
    return
  }
  func.func @transform_0(%arg0: i32) -> (i32, i32, i32) {
    %c0_i32 = arith.constant 0 : i32
    %c0_i32_0 = arith.constant 0 : i32
    %c0_i32_1 = arith.constant 0 : i32
    return %arg0, %c0_i32, %c0_i32_0 : i32, i32, i32
  }
  func.func @transform_1(%arg0: i32) -> (i32, i32) {
    %c0_i32 = arith.constant 0 : i32
    %c0_i32_0 = arith.constant 0 : i32
    %c0_i32_1 = arith.constant 0 : i32
    return %c0_i32, %c0_i32_0 : i32, i32
  }
  func.func @transform_2(%arg0: i32) -> (i32, i32) {
    %c0_i32 = arith.constant 0 : i32
    %c0_i32_0 = arith.constant 0 : i32
    %c0_i32_1 = arith.constant 0 : i32
    return %c0_i32, %c0_i32_0 : i32, i32
  }
  func.func @transform_3(%arg0: i32) -> (i32, i32) {
    %c0_i32 = arith.constant 0 : i32
    %c0_i32_0 = arith.constant 0 : i32
    %c0_i32_1 = arith.constant 0 : i32
    return %c0_i32, %c0_i32_0 : i32, i32
  }
  func.func @transform_4(%arg0: i32) -> (i32, i32) {
    %c0_i32 = arith.constant 0 : i32
    %c0_i32_0 = arith.constant 0 : i32
    %c0_i32_1 = arith.constant 0 : i32
    return %c0_i32, %c0_i32_0 : i32, i32
  }
  func.func @transform_5(%arg0: i32) -> (i32, i32) {
    %c0_i32 = arith.constant 0 : i32
    %c0_i32_0 = arith.constant 0 : i32
    %c0_i32_1 = arith.constant 0 : i32
    return %c0_i32, %c0_i32_0 : i32, i32
  }
  func.func @transform_6(%arg0: i32) -> (i32, i32) {
    %c0_i32 = arith.constant 0 : i32
    %c0_i32_0 = arith.constant 0 : i32
    %c0_i32_1 = arith.constant 0 : i32
    return %c0_i32, %c0_i32_0 : i32, i32
  }
  func.func @transform_7(%arg0: i32) -> i32 {
    %c0_i32 = arith.constant 0 : i32
    %c0_i32_0 = arith.constant 0 : i32
    return %c0_i32 : i32
  }
  func.func @transform_8(%arg0: i32) -> i32 {
    %c0_i32 = arith.constant 0 : i32
    %c0_i32_0 = arith.constant 0 : i32
    return %c0_i32 : i32
  }
  func.func @transform_9(%arg0: i32) -> (i32, i32, i32) {
    %c0_i32 = arith.constant 0 : i32
    %c0_i32_0 = arith.constant 0 : i32
    %c0_i32_1 = arith.constant 0 : i32
    return %arg0, %c0_i32, %c0_i32_0 : i32, i32, i32
  }
}

</mosaic_0001>

<llo_original>
// kernel: quantized_times_attention3d.1
$region0: #{quantized_times_attention3d.1}
  #allocation0 [shape = 'u32[]', space=smem, size = 0x4, offset = 0x4, fixed_abs, tag = 'smem constant byte address 0x4 - core index']
  #allocation1 [shape = 'u32[144,128]{1,0:T(1,128)}', space=vmem, size = 0x12000, scoped, tag = 'internal scratch']
  %s0 = inlined_call_operand.vmem [shape: f32[2,16,64], index: 0, kind: input, shape index: {}]
  %s1 = inlined_call_operand.vmem [shape: bf16[64,96], index: 1, kind: input, shape index: {}]
  %s2 = inlined_call_operand.vmem [shape: bf16[32,64], index: 2, kind: input, shape index: {}]
  %s3 = inlined_call_operand.vmem [shape: f32[1,64], index: 3, kind: input, shape index: {}]
  %s4 = inlined_call_operand.vmem [shape: f32[1,96], index: 4, kind: input, shape index: {}]
  %s5 = inlined_call_operand.vmem [shape: f32[1,96], index: 5, kind: input, shape index: {}]
  %s6 = inlined_call_operand.vmem [shape: f32[1,96], index: 6, kind: input, shape index: {}]
  %s7 = inlined_call_operand.vmem [shape: f32[4], index: 7, kind: input, shape index: {}]
  %s8 = inlined_call_operand.vmem [shape: f32[4], index: 8, kind: input, shape index: {}]
  %s9 = inlined_call_operand.hbm [shape: f32[2,16,64], index: 9, kind: output, shape index: {}]
  %s10 = sld [smem:[#allocation0]]
  $region77: #{quantized_times_attention3d.1} parent=0
    _
  %s12 = ssub.s32 1, %s10
  %s13 = scalar_select 0, %s12, %s10
  $region1: #{quantized_times_attention3d.1} parent=0
    #allocation2 [shape = 'u8[512]{0}', space=smem, size = 0x200, scoped, tag = 'input window, operand 7, single buffered']
    #allocation3 [shape = 's32[2]{0}', space=sflag, size = 0x8, scoped, tag = 'scoped memory for quantized_times_attention3d.1']
    #allocation4 [shape = 's32[2]{0}', space=sflag, size = 0x8, scoped, tag = 'scoped memory for quantized_times_attention3d.1']
    #allocation5 [shape = 'u8[512]{0}', space=smem, size = 0x200, scoped, tag = 'input window, operand 8, single buffered']
    #allocation6 [shape = 's32[1]{0}', space=sflag, size = 0x4, scoped, tag = 'scoped memory for quantized_times_attention3d.1']
    #allocation7 [shape = 'u8[16384]{0}', space=vmem, size = 0x4000, scoped, tag = 'output window, operand 0']
    %14 = vsyncpa [#allocation4], 0
    %15 = vsyncpa [#allocation6], 0
    %16 = vsyncpa [#allocation3], 0
    %s17 = scalar_lea.sflag [#allocation3], 1
    %18 = vsyncpa %s17, 0
    loop: start=0, step=1, limit=4
    $region2: #{quantized_times_attention3d.1} parent=1 // loop_pre_header
      _
    $region3: #{quantized_times_attention3d.1} parent=1 // loop_header
      %s20 = sphi 0, %s24
      %p21 = scmp.ge.s32.totalorder %s20, 4
      %s30 = sphi 0, %s32
      %s33 = sphi 0, %s30
      %s34 = sphi 0, %s33
      %s50 = sphi 0, %s34
      %s54 = sphi 0, %s54
      %s56 = sphi 0, %s54
      %s57 = sphi 0, %s56
      %s71 = sphi 0, %s57
      %s75 = sphi 0, %s75
      %s77 = sphi 0, %s75
      %s78 = sphi 0, %s77
      %s92 = sphi 0, %s78
      %s96 = sphi 0, %s96
      %s98 = sphi 0, %s96
      %s99 = sphi 0, %s98
      %s113 = sphi 0, %s99
      %s117 = sphi 0, %s117
      %s119 = sphi 0, %s117
      %s120 = sphi 0, %s119
      %s134 = sphi 0, %s120
      %s138 = sphi 0, %s138
      %s140 = sphi 0, %s138
      %s141 = sphi 0, %s140
      %s155 = sphi 0, %s141
      %s159 = sphi 0, %s159
      %s161 = sphi 0, %s159
      %s162 = sphi 0, %s161
      %s176 = sphi 0, %s162
      %s180 = sphi 0, %s180
      %s182 = sphi 0, %s180
      %s183 = sphi 0, %s182
      %s197 = sphi 0, %s183
      %s201 = sphi 0, %s201
      %s203 = sphi 0, %s201
      %s204 = sphi 0, %s203
      %s218 = sphi 0, %s204
      %s224 = sphi 0, %s226
      %s227 = sphi 0, %s224
      %s228 = sphi 0, %s227
      %s244 = sphi 0, %s228
    $region4: #{quantized_times_attention3d.1} parent=1 // loop_header_branch
      %23 = sbr.rel (%p21) target = $region8
    $region5: #{quantized_times_attention3d.1} parent=1 // loop_body
      %s25 = ssub.s32 %s20, 1
      %s26 = ssub.s32 %s20, 2
      %s27 = sadd.s32 %s20, 1
      %s28 = ssub.s32 %s20, %s27
      %p29 = scmp.eq.s32.totalorder %s28, 0
      %s31 = sadd.s32 %s30, 1
      %s32 = scalar_select %p29, %s30, %s31
      %p35 = pneg %p29
      %p36 = scmp.eq.s32.totalorder %s20, 1
      %p37 = por %p35, %p36
      %p38 = scmp.ne.s32.totalorder %s30, %s33
      %p39 = scmp.eq.s32.totalorder %s20, 0
      %p40 = por %p38, %p39
      %p41 = scmp.ne.s32.totalorder %s30, %s33
      %p42 = scmp.eq.s32.totalorder %s25, 1
      %p43 = por %p41, %p42
      %p44 = scmp.ne.s32.totalorder %s33, %s34
      %p45 = scmp.eq.s32.totalorder %s25, 0
      %p46 = por %p44, %p45
      %p47 = scmp.ne.s32.totalorder %s33, %s34
      %p48 = scmp.eq.s32.totalorder %s26, 1
      %p49 = por %p47, %p48
      %p51 = scmp.ne.s32.totalorder %s34, %s50
      %p52 = scmp.eq.s32.totalorder %s26, 0
      %p53 = por %p51, %p52
      %s55 = sadd.s32 %s54, 1
      %p58 = scmp.eq.s32.totalorder %s20, 1
      %p59 = scmp.ne.s32.totalorder %s54, %s56
      %p60 = scmp.eq.s32.totalorder %s20, 0
      %p61 = por %p59, %p60
      %p62 = scmp.ne.s32.totalorder %s54, %s56
      %p63 = scmp.eq.s32.totalorder %s25, 1
      %p64 = por %p62, %p63
      %p65 = scmp.ne.s32.totalorder %s56, %s57
      %p66 = scmp.eq.s32.totalorder %s25, 0
      %p67 = por %p65, %p66
      %p68 = scmp.ne.s32.totalorder %s56, %s57
      %p69 = scmp.eq.s32.totalorder %s26, 1
      %p70 = por %p68, %p69
      %p72 = scmp.ne.s32.totalorder %s57, %s71
      %p73 = scmp.eq.s32.totalorder %s26, 0
      %p74 = por %p72, %p73
      %s76 = sadd.s32 %s75, 1
      %p79 = scmp.eq.s32.totalorder %s20, 1
      %p80 = scmp.ne.s32.totalorder %s75, %s77
      %p81 = scmp.eq.s32.totalorder %s20, 0
      %p82 = por %p80, %p81
      %p83 = scmp.ne.s32.totalorder %s75, %s77
      %p84 = scmp.eq.s32.totalorder %s25, 1
      %p85 = por %p83, %p84
      %p86 = scmp.ne.s32.totalorder %s77, %s78
      %p87 = scmp.eq.s32.totalorder %s25, 0
      %p88 = por %p86, %p87
      %p89 = scmp.ne.s32.totalorder %s77, %s78
      %p90 = scmp.eq.s32.totalorder %s26, 1
      %p91 = por %p89, %p90
      %p93 = scmp.ne.s32.totalorder %s78, %s92
      %p94 = scmp.eq.s32.totalorder %s26, 0
      %p95 = por %p93, %p94
      %s97 = sadd.s32 %s96, 1
      %p100 = scmp.eq.s32.totalorder %s20, 1
      %p101 = scmp.ne.s32.totalorder %s96, %s98
      %p102 = scmp.eq.s32.totalorder %s20, 0
      %p103 = por %p101, %p102
      %p104 = scmp.ne.s32.totalorder %s96, %s98
      %p105 = scmp.eq.s32.totalorder %s25, 1
      %p106 = por %p104, %p105
      %p107 = scmp.ne.s32.totalorder %s98, %s99
      %p108 = scmp.eq.s32.totalorder %s25, 0
      %p109 = por %p107, %p108
      %p110 = scmp.ne.s32.totalorder %s98, %s99
      %p111 = scmp.eq.s32.totalorder %s26, 1
      %p112 = por %p110, %p111
      %p114 = scmp.ne.s32.totalorder %s99, %s113
      %p115 = scmp.eq.s32.totalorder %s26, 0
      %p116 = por %p114, %p115
      %s118 = sadd.s32 %s117, 1
      %p121 = scmp.eq.s32.totalorder %s20, 1
      %p122 = scmp.ne.s32.totalorder %s117, %s119
      %p123 = scmp.eq.s32.totalorder %s20, 0
      %p124 = por %p122, %p123
      %p125 = scmp.ne.s32.totalorder %s117, %s119
      %p126 = scmp.eq.s32.totalorder %s25, 1
      %p127 = por %p125, %p126
      %p128 = scmp.ne.s32.totalorder %s119, %s120
      %p129 = scmp.eq.s32.totalorder %s25, 0
      %p130 = por %p128, %p129
      %p131 = scmp.ne.s32.totalorder %s119, %s120
      %p132 = scmp.eq.s32.totalorder %s26, 1
      %p133 = por %p131, %p132
      %p135 = scmp.ne.s32.totalorder %s120, %s134
      %p136 = scmp.eq.s32.totalorder %s26, 0
      %p137 = por %p135, %p136
      %s139 = sadd.s32 %s138, 1
      %p142 = scmp.eq.s32.totalorder %s20, 1
      %p143 = scmp.ne.s32.totalorder %s138, %s140
      %p144 = scmp.eq.s32.totalorder %s20, 0
      %p145 = por %p143, %p144
      %p146 = scmp.ne.s32.totalorder %s138, %s140
      %p147 = scmp.eq.s32.totalorder %s25, 1
      %p148 = por %p146, %p147
      %p149 = scmp.ne.s32.totalorder %s140, %s141
      %p150 = scmp.eq.s32.totalorder %s25, 0
      %p151 = por %p149, %p150
      %p152 = scmp.ne.s32.totalorder %s140, %s141
      %p153 = scmp.eq.s32.totalorder %s26, 1
      %p154 = por %p152, %p153
      %p156 = scmp.ne.s32.totalorder %s141, %s155
      %p157 = scmp.eq.s32.totalorder %s26, 0
      %p158 = por %p156, %p157
      %s160 = sadd.s32 %s159, 1
      %p163 = scmp.eq.s32.totalorder %s20, 1
      %p164 = scmp.ne.s32.totalorder %s159, %s161
      %p165 = scmp.eq.s32.totalorder %s20, 0
      %p166 = por %p164, %p165
      %p167 = scmp.ne.s32.totalorder %s159, %s161
      %p168 = scmp.eq.s32.totalorder %s25, 1
      %p169 = por %p167, %p168
      %p170 = scmp.ne.s32.totalorder %s161, %s162
      %p171 = scmp.eq.s32.totalorder %s25, 0
      %p172 = por %p170, %p171
      %p173 = scmp.ne.s32.totalorder %s161, %s162
      %p174 = scmp.eq.s32.totalorder %s26, 1
      %p175 = por %p173, %p174
      %p177 = scmp.ne.s32.totalorder %s162, %s176
      %p178 = scmp.eq.s32.totalorder %s26, 0
      %p179 = por %p177, %p178
      %s181 = sadd.s32 %s180, 1
      %p184 = scmp.eq.s32.totalorder %s20, 1
      %p185 = scmp.ne.s32.totalorder %s180, %s182
      %p186 = scmp.eq.s32.totalorder %s20, 0
      %p187 = por %p185, %p186
      %p188 = scmp.ne.s32.totalorder %s180, %s182
      %p189 = scmp.eq.s32.totalorder %s25, 1
      %p190 = por %p188, %p189
      %p191 = scmp.ne.s32.totalorder %s182, %s183
      %p192 = scmp.eq.s32.totalorder %s25, 0
      %p193 = por %p191, %p192
      %p194 = scmp.ne.s32.totalorder %s182, %s183
      %p195 = scmp.eq.s32.totalorder %s26, 1
      %p196 = por %p194, %p195
      %p198 = scmp.ne.s32.totalorder %s183, %s197
      %p199 = scmp.eq.s32.totalorder %s26, 0
      %p200 = por %p198, %p199
      %s202 = sadd.s32 %s201, 1
      %p205 = scmp.eq.s32.totalorder %s20, 1
      %p206 = scmp.ne.s32.totalorder %s201, %s203
      %p207 = scmp.eq.s32.totalorder %s20, 0
      %p208 = por %p206, %p207
      %p209 = scmp.ne.s32.totalorder %s201, %s203
      %p210 = scmp.eq.s32.totalorder %s25, 1
      %p211 = por %p209, %p210
      %p212 = scmp.ne.s32.totalorder %s203, %s204
      %p213 = scmp.eq.s32.totalorder %s25, 0
      %p214 = por %p212, %p213
      %p215 = scmp.ne.s32.totalorder %s203, %s204
      %p216 = scmp.eq.s32.totalorder %s26, 1
      %p217 = por %p215, %p216
      %p219 = scmp.ne.s32.totalorder %s204, %s218
      %p220 = scmp.eq.s32.totalorder %s26, 0
      %p221 = por %p219, %p220
      %s222 = ssub.s32 %s20, %s27
      %p223 = scmp.eq.s32.totalorder %s222, 0
      %s225 = sadd.s32 %s224, 1
      %s226 = scalar_select %p223, %s224, %s225
      %p229 = pneg %p223
      %p230 = scmp.eq.s32.totalorder %s20, 1
      %p231 = por %p229, %p230
      %p232 = scmp.ne.s32.totalorder %s224, %s227
      %p233 = scmp.eq.s32.totalorder %s20, 0
      %p234 = por %p232, %p233
      %p235 = scmp.ne.s32.totalorder %s224, %s227
      %p236 = scmp.eq.s32.totalorder %s25, 1
      %p237 = por %p235, %p236
      %p238 = scmp.ne.s32.totalorder %s227, %s228
      %p239 = scmp.eq.s32.totalorder %s25, 0
      %p240 = por %p238, %p239
      %p241 = scmp.ne.s32.totalorder %s227, %s228
      %p242 = scmp.eq.s32.totalorder %s26, 1
      %p243 = por %p241, %p242
      %p245 = scmp.ne.s32.totalorder %s228, %s244
      %p246 = scmp.eq.s32.totalorder %s26, 0
      %p247 = por %p245, %p246
      %p248 = scmp.le.s32.totalorder 1, %s20
      %p249 = scmp.lt.s32.totalorder %s20, 3
      %p250 = pnand %p248, %p249
      %p251 = pneg %p250
      // Predicated region
      $region9: #{quantized_times_attention3d.1} parent=5 // pred_check
        _
      $region10: #{quantized_times_attention3d.1} parent=5 // pred_check_branch
        %253 = sbr.rel (%p250) target = $region12
      $region11: #{quantized_times_attention3d.1} parent=5 // pred_region
        %s254 = ssub.s32 %s20, 1
        // Predicated region
        $region13: #{quantized_times_attention3d.1} parent=11 // pred_check
          %p255 = pneg %p67
        $region14: #{quantized_times_attention3d.1} parent=11 // pred_check_branch
          %257 = sbr.rel (%p255) target = $region16
        $region15: #{quantized_times_attention3d.1} parent=11 // pred_region
          _
        $region16: #{quantized_times_attention3d.1} parent=11 // pred_fallthru
          _
        // Predicated region
        $region17: #{quantized_times_attention3d.1} parent=11 // pred_check
          %p258 = pneg %p88
        $region18: #{quantized_times_attention3d.1} parent=11 // pred_check_branch
          %260 = sbr.rel (%p258) target = $region20
        $region19: #{quantized_times_attention3d.1} parent=11 // pred_region
          _
        $region20: #{quantized_times_attention3d.1} parent=11 // pred_fallthru
          _
        // Predicated region
        $region21: #{quantized_times_attention3d.1} parent=11 // pred_check
          %p261 = pneg %p109
        $region22: #{quantized_times_attention3d.1} parent=11 // pred_check_branch
          %263 = sbr.rel (%p261) target = $region24
        $region23: #{quantized_times_attention3d.1} parent=11 // pred_region
          _
        $region24: #{quantized_times_attention3d.1} parent=11 // pred_fallthru
          _
        // Predicated region
        $region25: #{quantized_times_attention3d.1} parent=11 // pred_check
          %p264 = pneg %p130
        $region26: #{quantized_times_attention3d.1} parent=11 // pred_check_branch
          %266 = sbr.rel (%p264) target = $region28
        $region27: #{quantized_times_attention3d.1} parent=11 // pred_region
          _
        $region28: #{quantized_times_attention3d.1} parent=11 // pred_fallthru
          _
        // Predicated region
        $region29: #{quantized_times_attention3d.1} parent=11 // pred_check
          %p267 = pneg %p151
        $region30: #{quantized_times_attention3d.1} parent=11 // pred_check_branch
          %269 = sbr.rel (%p267) target = $region32
        $region31: #{quantized_times_attention3d.1} parent=11 // pred_region
          _
        $region32: #{quantized_times_attention3d.1} parent=11 // pred_fallthru
          _
        // Predicated region
        $region33: #{quantized_times_attention3d.1} parent=11 // pred_check
          %p270 = pneg %p172
        $region34: #{quantized_times_attention3d.1} parent=11 // pred_check_branch
          %272 = sbr.rel (%p270) target = $region36
        $region35: #{quantized_times_attention3d.1} parent=11 // pred_region
          _
        $region36: #{quantized_times_attention3d.1} parent=11 // pred_fallthru
          _
        // Predicated region
        $region37: #{quantized_times_attention3d.1} parent=11 // pred_check
          %p273 = pneg %p193
        $region38: #{quantized_times_attention3d.1} parent=11 // pred_check_branch
          %275 = sbr.rel (%p273) target = $region40
        $region39: #{quantized_times_attention3d.1} parent=11 // pred_region
          %s277 = ssub.s32 16, 16
          %278 = vsyncadd [#allocation4], %s277
          %s280 = sshll.u32 %s7, 4
          %s281 = int_to_ptr.vmem [resolvable:$true] %s280
          %283 = dma.vmem_to_smem %s281, 16, [#allocation2], [#allocation4]
        $region40: #{quantized_times_attention3d.1} parent=11 // pred_fallthru
          _
        // Predicated region
        $region41: #{quantized_times_attention3d.1} parent=11 // pred_check
          %p284 = pneg %p214
        $region42: #{quantized_times_attention3d.1} parent=11 // pred_check_branch
          %286 = sbr.rel (%p284) target = $region44
        $region43: #{quantized_times_attention3d.1} parent=11 // pred_region
          %s288 = ssub.s32 16, 16
          %289 = vsyncadd [#allocation6], %s288
          %s291 = sshll.u32 %s8, 4
          %s292 = int_to_ptr.vmem [resolvable:$true] %s291
          %294 = dma.vmem_to_smem %s292, 16, [#allocation5], [#allocation6]
        $region44: #{quantized_times_attention3d.1} parent=11 // pred_fallthru
          _
      $region12: #{quantized_times_attention3d.1} parent=5 // pred_fallthru
        _
      %p295 = scmp.lt.s32.totalorder %s20, 2
      // Predicated region
      $region45: #{quantized_times_attention3d.1} parent=5 // pred_check
        %p296 = pneg %p295
      $region46: #{quantized_times_attention3d.1} parent=5 // pred_check_branch
        %298 = sbr.rel (%p296) target = $region48
      $region47: #{quantized_times_attention3d.1} parent=5 // pred_region
        // Predicated region
        $region49: #{quantized_times_attention3d.1} parent=47 // pred_check
          %p299 = pneg %p40
        $region50: #{quantized_times_attention3d.1} parent=47 // pred_check_branch
          %301 = sbr.rel (%p299) target = $region52
        $region51: #{quantized_times_attention3d.1} parent=47 // pred_region
          %p302 = scmp.lt.s32.totalorder %s20, 1
          %s303 = scalar_select %p302, %s20, 1
          %s304 = smul.addr %s303, 2
          %s305 = smul.addr %s304, 8
          %s306 = scalar_lea.vmem %s0, %s305
        $region52: #{quantized_times_attention3d.1} parent=47 // pred_fallthru
          _
      $region48: #{quantized_times_attention3d.1} parent=5 // pred_fallthru
        _
      %p307 = scmp.le.s32.totalorder 1, %s20
      %p308 = scmp.lt.s32.totalorder %s20, 3
      %p309 = pnand %p307, %p308
      %p310 = pneg %p309
      // Predicated region
      $region53: #{quantized_times_attention3d.1} parent=5 // pred_check
        _
      $region54: #{quantized_times_attention3d.1} parent=5 // pred_check_branch
        %312 = sbr.rel (%p309) target = $region56
      $region55: #{quantized_times_attention3d.1} parent=5 // pred_region
        %s313 = ssub.s32 %s20, 1
        // Predicated region
        $region57: #{quantized_times_attention3d.1} parent=55 // pred_check
          %p314 = pneg %p193
        $region58: #{quantized_times_attention3d.1} parent=55 // pred_check_branch
          %316 = sbr.rel (%p314) target = $region60
        $region59: #{quantized_times_attention3d.1} parent=55 // pred_region
          %317 = dma.done [#allocation4], 16
        $region60: #{quantized_times_attention3d.1} parent=55 // pred_fallthru
          _
        // Predicated region
        $region61: #{quantized_times_attention3d.1} parent=55 // pred_check
          %p318 = pneg %p214
        $region62: #{quantized_times_attention3d.1} parent=55 // pred_check_branch
          %320 = sbr.rel (%p318) target = $region64
        $region63: #{quantized_times_attention3d.1} parent=55 // pred_region
          %321 = dma.done [#allocation6], 16
        $region64: #{quantized_times_attention3d.1} parent=55 // pred_fallthru
          _
        %322 = sfence
        %p323 = scmp.lt.s32.totalorder %s25, 1
        %s324 = scalar_select %p323, %s25, 1
        %s325 = smul.addr %s324, 2
        %s326 = smul.addr %s325, 8
        %s327 = scalar_lea.vmem %s0, %s326
        %p328 = pneg %p46
        %p329 = pneg %p43
        %p330 = pneg %p67
        %p331 = pneg %p64
        %p332 = pneg %p88
        %p333 = pneg %p85
        %p334 = pneg %p109
        %p335 = pneg %p106
        %p336 = pneg %p130
        %p337 = pneg %p127
        %p338 = pneg %p151
        %p339 = pneg %p148
        %p340 = pneg %p172
        %p341 = pneg %p169
        %p342 = pneg %p193
        %p343 = pneg %p190
        %p344 = pneg %p214
        %p345 = pneg %p211
        %p346 = pneg %p240
        %p347 = pneg %p237
        %s348 = sand.u32 %s227, 1
        %s349 = scalar_lea.sflag [#allocation3], %s348
        %s350 = sand.u32 %s227, 1
        %s351 = smul.addr %s350, 16
        %s352 = scalar_lea.vmem [#allocation7], %s351
        %p353 = scmp.lt.s32.totalorder %s25, 1
        %s354 = scalar_select %p353, %s25, 1
        %s355 = smul.addr %s354, 2
        %s356 = smul.addr %s355, 8
        %s357 = scalar_lea.vmem %s0, %s356
        %v359 = vld [vmem:[%s357] sm:$0xff]
        %v360 = vld [vmem:[%s357 + $0x8] sm:$0xff]
        %v361 = vpack.c.bf16 %v360, %v359
        %v362 = vld [vmem:[%s1] sm:$0xf]
        %v363 = vld [vmem:[%s1 + $0x4] sm:$0xf]
        %v364 = vld [vmem:[%s1 + $0x8] sm:$0xf]
        %v365 = vld [vmem:[%s1 + $0xc] sm:$0xf]
        %v366 = vld [vmem:[%s1 + $0x10] sm:$0xf]
        %v367 = vld [vmem:[%s1 + $0x14] sm:$0xf]
        %v368 = vld [vmem:[%s1 + $0x18] sm:$0xf]
        %v369 = vld [vmem:[%s1 + $0x1c] sm:$0xf]
        %v370 = vld [vmem:[%s4] sm:$0x1]
        %v372 = vlaneseq
        %v373 = vshrl.u32 %v372, 7
        %v374 = vsub.s32 0, %v373
        %v375 = vrot.slane %v370, %v374
        %v385 = vunpack.c.l.b16 %v362
        %v386 = vunpack.c.l.b16 %v363
        %v387 = vunpack.c.l.b16 %v364
        %v388 = vunpack.c.l.b16 %v365
        %v389 = vunpack.c.l.b16 %v366
        %v390 = vunpack.c.l.b16 %v367
        %v391 = vunpack.c.l.b16 %v368
        %v392 = vunpack.c.l.b16 %v369
        %v393 = vpack.c.b16 %v386, %v385
        %v394 = vpack.c.b16 %v388, %v387
        %v395 = vpack.c.b16 %v390, %v389
        %v396 = vpack.c.b16 %v392, %v391
        %vm401 = vcmask 523264
        %v403 = vsel %vm401, %v361, 0
        %405 = vmatprep.subr.bf16.mxu0 0
        %406 = vmatpush1.bf16.msra.mxu0 %v393
        %407 = vmatprep.subr.bf16.mxu0 0
        %408 = vmatpush1.bf16.msra.mxu0 %v394
        %409 = vmatprep.subr.bf16.mxu0 0
        %410 = vmatpush1.bf16.msra.mxu0 %v395
        %411 = vmatprep.subr.bf16.mxu0 0
        %412 = vmatpush1.bf16.msra.mxu0 %v396
        %413 = vmatprep.subr.bf16.mxu0 0
        %414 = vmatpush1.bf16.msra.mxu0 0
        %415 = vmatprep.subr.bf16.mxu0 0
        %416 = vmatpush1.bf16.msra.mxu0 0
        %417 = vmatprep.subr.bf16.mxu0 0
        %418 = vmatpush1.bf16.msra.mxu0 0
        %419 = vmatprep.subr.bf16.mxu0 0
        %420 = vmatpush1.bf16.msra.mxu0 0
        %421 = vmatprep.subr.bf16.mxu0 0
        %422 = vmatpush1.bf16.msra.mxu0 0
        %423 = vmatprep.subr.bf16.mxu0 0
        %424 = vmatpush1.bf16.msra.mxu0 0
        %425 = vmatprep.subr.bf16.mxu0 0
        %426 = vmatpush1.bf16.msra.mxu0 0
        %427 = vmatprep.subr.bf16.mxu0 0
        %428 = vmatpush1.bf16.msra.mxu0 0
        %429 = vmatprep.subr.bf16.mxu0 0
        %430 = vmatpush1.bf16.msra.mxu0 0
        %431 = vmatprep.subr.bf16.mxu0 0
        %432 = vmatpush1.bf16.msra.mxu0 0
        %433 = vmatprep.subr.bf16.mxu0 0
        %434 = vmatpush1.bf16.msra.mxu0 0
        %435 = vmatprep.subr.bf16.mxu0 0
        %436 = vmatpush1.bf16.msra.mxu0 0
        %437 = vmatprep.mubr.bf16.mxu0 0
        %438 = vmatmul.mubr.bf16.gmra.mrb[0].mxu0 %v403
        %v439 = vpop.f32.mrb[0].mxu0
        %v440 = vadd.f32 %v375, %v439
        %v441 = vpop.f32.mrb[0].mxu0
        %v442 = vpop.f32.mrb[0].mxu0
        %v443 = vadd.f32 %v375, %v442
        %v444 = vpop.f32.mrb[0].mxu0
        %445 = vdwg.mxu0
        %v446 = vld [vmem:[%s5] sm:$0x1]
        %v448 = vlaneseq
        %v449 = vshrl.u32 %v448, 7
        %v450 = vsub.s32 0, %v449
        %v451 = vrot.slane %v446, %v450
        %v453 = vmul.f32 %v440, %v451
        %v454 = vmul.f32 %v443, %v451
        %v455 = vround.ne.pseudo %v453
        %v456 = vround.ne.pseudo %v454
        %v457 = vmax.f32 %v455, -8.0
        %v458 = vmax.f32 %v456, -8.0
        %v459 = vmin.f32 %v457, 7.0
        %v460 = vmin.f32 %v458, 7.0
        %v461 = vld [vmem:[%s6] sm:$0x1]
        %v463 = vlaneseq
        %v464 = vshrl.u32 %v463, 7
        %v465 = vsub.s32 0, %v464
        %v466 = vrot.slane %v461, %v465
        %v468 = vmul.f32 %v459, %v466
        %v469 = vmul.f32 %v460, %v466
        %v470 = vpack.c.bf16 %v469, %v468
        %472 = vrot.lane.b32.xlu0 %v470, 96
        %v473 = vpop.permute.xlu0 %472
        %vm474 = vcmask 64512
        %v476 = vsel %vm474, %v470, 0
        %v479 = vsel %vm474, %v473, 0
        %481 = vmatprep.subr.bf16.mxu0 0
        %482 = vmatpush1.bf16.xpose.msra.mxu0 %v479
        %483 = vmatprep.subr.bf16.mxu0 0
        %484 = vmatpush1.bf16.xpose.msra.mxu0 0
        %485 = vmatprep.subr.bf16.mxu0 0
        %486 = vmatpush1.bf16.xpose.msra.mxu0 0
        %487 = vmatprep.subr.bf16.mxu0 0
        %488 = vmatpush1.bf16.xpose.msra.mxu0 0
        %489 = vmatprep.subr.bf16.mxu0 0
        %490 = vmatpush1.bf16.xpose.msra.mxu0 0
        %491 = vmatprep.subr.bf16.mxu0 0
        %492 = vmatpush1.bf16.xpose.msra.mxu0 0
        %493 = vmatprep.subr.bf16.mxu0 0
        %494 = vmatpush1.bf16.xpose.msra.mxu0 0
        %495 = vmatprep.subr.bf16.mxu0 0
        %496 = vmatpush1.bf16.xpose.msra.mxu0 0
        %497 = vmatprep.subr.bf16.mxu0 0
        %498 = vmatpush1.bf16.xpose.msra.mxu0 0
        %499 = vmatprep.subr.bf16.mxu0 0
        %500 = vmatpush1.bf16.xpose.msra.mxu0 0
        %501 = vmatprep.subr.bf16.mxu0 0
        %502 = vmatpush1.bf16.xpose.msra.mxu0 0
        %503 = vmatprep.subr.bf16.mxu0 0
        %504 = vmatpush1.bf16.xpose.msra.mxu0 0
        %505 = vmatprep.subr.bf16.mxu0 0
        %506 = vmatpush1.bf16.xpose.msra.mxu0 0
        %507 = vmatprep.subr.bf16.mxu0 0
        %508 = vmatpush1.bf16.xpose.msra.mxu0 0
        %509 = vmatprep.subr.bf16.mxu0 0
        %510 = vmatpush1.bf16.xpose.msra.mxu0 0
        %511 = vmatprep.subr.bf16.mxu0 0
        %512 = vmatpush1.bf16.xpose.msra.mxu0 0
        %513 = vmatprep.mubr.bf16.mxu0 0
        %514 = vmatmul.mubr.bf16.gmra.mrb[0].mxu0 %v476
        %v515 = vpop.f32.mrb[0].mxu0
        %v516 = vadd.f32 0.0, %v515
        %v517 = vpop.f32.mrb[0].mxu0
        %v518 = vpop.f32.mrb[0].mxu0
        %v519 = vadd.f32 0.0, %v518
        %v520 = vpop.f32.mrb[0].mxu0
        %521 = vdwg.mxu0
        %vm522 = vcmask 130048
        %v523 = vsel %vm522, %v516, -inf
        %524 = vmax.xlane.f32.xlu0 %v523
        %v525 = vpop.xlane.xlu0 %524
        %v526 = vsel %vm522, %v519, -inf
        %527 = vmax.xlane.f32.xlu0 %v526
        %v528 = vpop.xlane.xlu0 %527
        %v529 = vsub.f32 %v516, %v525
        %v530 = vsub.f32 %v519, %v528
        %v531 = vmul.f32 %v529, 1.442695
        %v532 = vpow.pop %v531
        %v533 = vmul.f32 %v530, 1.442695
        %v534 = vpow.pop %v533
        %v535 = vsel %vm522, %v532, 0.0
        %536 = vadd.xlane.f32.xlu0 %v535
        %v537 = vpop.xlane.xlu0 %536
        %v538 = vsel %vm522, %v534, 0.0
        %539 = vadd.xlane.f32.xlu0 %v538
        %v540 = vpop.xlane.xlu0 %539
        %v541 = vrcp.pop %v537
        %v542 = vrcp.pop %v540
        %v543 = vmul.f32 %v532, %v541
        %v544 = vmul.f32 %v534, %v542
        %s545 = sld [smem:[#allocation2]]
        %v546 = vstv %s545
        %v547 = vmul.f32 %v543, %v546
        %v548 = vmul.f32 %v544, %v546
        %v549 = vround.ne.pseudo %v547
        %v550 = vround.ne.pseudo %v548
        %v551 = vmax.f32 %v549, 0.0
        %v552 = vmax.f32 %v550, 0.0
        %v553 = vmin.f32 %v551, 255.0
        %v554 = vmin.f32 %v552, 255.0
        %s555 = sld [smem:[#allocation5]]
        %v556 = vstv %s555
        %v557 = vmul.f32 %v553, %v556
        %v558 = vmul.f32 %v554, %v556
        %v559 = vpack.c.bf16 %v558, %v557
        %560 = vrot.lane.b32.xlu0 %v470, 64
        %v561 = vpop.permute.xlu0 %560
        %v564 = vsel %vm522, %v559, 0
        %566 = vmatprep.subr.bf16.mxu0 0
        %567 = vmatpush1.bf16.msra.mxu0 %v561
        %568 = vmatprep.subr.bf16.mxu0 0
        %569 = vmatpush1.bf16.msra.mxu0 0
        %570 = vmatprep.subr.bf16.mxu0 0
        %571 = vmatpush1.bf16.msra.mxu0 0
        %572 = vmatprep.subr.bf16.mxu0 0
        %573 = vmatpush1.bf16.msra.mxu0 0
        %574 = vmatprep.subr.bf16.mxu0 0
        %575 = vmatpush1.bf16.msra.mxu0 0
        %576 = vmatprep.subr.bf16.mxu0 0
        %577 = vmatpush1.bf16.msra.mxu0 0
        %578 = vmatprep.subr.bf16.mxu0 0
        %579 = vmatpush1.bf16.msra.mxu0 0
        %580 = vmatprep.subr.bf16.mxu0 0
        %581 = vmatpush1.bf16.msra.mxu0 0
        %582 = vmatprep.subr.bf16.mxu0 0
        %583 = vmatpush1.bf16.msra.mxu0 0
        %584 = vmatprep.subr.bf16.mxu0 0
        %585 = vmatpush1.bf16.msra.mxu0 0
        %586 = vmatprep.subr.bf16.mxu0 0
        %587 = vmatpush1.bf16.msra.mxu0 0
        %588 = vmatprep.subr.bf16.mxu0 0
        %589 = vmatpush1.bf16.msra.mxu0 0
        %590 = vmatprep.subr.bf16.mxu0 0
        %591 = vmatpush1.bf16.msra.mxu0 0
        %592 = vmatprep.subr.bf16.mxu0 0
        %593 = vmatpush1.bf16.msra.mxu0 0
        %594 = vmatprep.subr.bf16.mxu0 0
        %595 = vmatpush1.bf16.msra.mxu0 0
        %596 = vmatprep.subr.bf16.mxu0 0
        %597 = vmatpush1.bf16.msra.mxu0 0
        %598 = vmatprep.mubr.bf16.mxu0 0
        %599 = vmatmul.mubr.bf16.gmra.mrb[0].mxu0 %v564
        %v600 = vpop.f32.mrb[0].mxu0
        %v601 = vadd.f32 0.0, %v600
        %v602 = vpop.f32.mrb[0].mxu0
        %v603 = vpop.f32.mrb[0].mxu0
        %v604 = vadd.f32 0.0, %v603
        %v605 = vpop.f32.mrb[0].mxu0
        %606 = vdwg.mxu0
        %607 = vrot.lane.b32.xlu0 %v470, 120
        %v608 = vpop.permute.xlu0 %607
        %609 = vrot.lane.b32.xlu0 %v470, 88
        %v610 = vpop.permute.xlu0 %609
        %v612 = vsel %vm474, %v608, 0
        %v615 = vsel %vm474, %v610, 0
        %617 = vmatprep.subr.bf16.mxu0 0
        %618 = vmatpush1.bf16.xpose.msra.mxu0 %v615
        %619 = vmatprep.subr.bf16.mxu0 0
        %620 = vmatpush1.bf16.xpose.msra.mxu0 0
        %621 = vmatprep.subr.bf16.mxu0 0
        %622 = vmatpush1.bf16.xpose.msra.mxu0 0
        %623 = vmatprep.subr.bf16.mxu0 0
        %624 = vmatpush1.bf16.xpose.msra.mxu0 0
        %625 = vmatprep.subr.bf16.mxu0 0
        %626 = vmatpush1.bf16.xpose.msra.mxu0 0
        %627 = vmatprep.subr.bf16.mxu0 0
        %628 = vmatpush1.bf16.xpose.msra.mxu0 0
        %629 = vmatprep.subr.bf16.mxu0 0
        %630 = vmatpush1.bf16.xpose.msra.mxu0 0
        %631 = vmatprep.subr.bf16.mxu0 0
        %632 = vmatpush1.bf16.xpose.msra.mxu0 0
        %633 = vmatprep.subr.bf16.mxu0 0
        %634 = vmatpush1.bf16.xpose.msra.mxu0 0
        %635 = vmatprep.subr.bf16.mxu0 0
        %636 = vmatpush1.bf16.xpose.msra.mxu0 0
        %637 = vmatprep.subr.bf16.mxu0 0
        %638 = vmatpush1.bf16.xpose.msra.mxu0 0
        %639 = vmatprep.subr.bf16.mxu0 0
        %640 = vmatpush1.bf16.xpose.msra.mxu0 0
        %641 = vmatprep.subr.bf16.mxu0 0
        %642 = vmatpush1.bf16.xpose.msra.mxu0 0
        %643 = vmatprep.subr.bf16.mxu0 0
        %644 = vmatpush1.bf16.xpose.msra.mxu0 0
        %645 = vmatprep.subr.bf16.mxu0 0
        %646 = vmatpush1.bf16.xpose.msra.mxu0 0
        %647 = vmatprep.subr.bf16.mxu0 0
        %648 = vmatpush1.bf16.xpose.msra.mxu0 0
        %649 = vmatprep.mubr.bf16.mxu0 0
        %650 = vmatmul.mubr.bf16.gmra.mrb[0].mxu0 %v612
        %v651 = vpop.f32.mrb[0].mxu0
        %v652 = vadd.f32 0.0, %v651
        %v653 = vpop.f32.mrb[0].mxu0
        %v654 = vpop.f32.mrb[0].mxu0
        %v655 = vadd.f32 0.0, %v654
        %v656 = vpop.f32.mrb[0].mxu0
        %657 = vdwg.mxu0
        %v658 = vsel %vm522, %v652, -inf
        %659 = vmax.xlane.f32.xlu0 %v658
        %v660 = vpop.xlane.xlu0 %659
        %v661 = vsel %vm522, %v655, -inf
        %662 = vmax.xlane.f32.xlu0 %v661
        %v663 = vpop.xlane.xlu0 %662
        %v664 = vsub.f32 %v652, %v660
        %v665 = vsub.f32 %v655, %v663
        %v666 = vmul.f32 %v664, 1.442695
        %v667 = vpow.pop %v666
        %v668 = vmul.f32 %v665, 1.442695
        %v669 = vpow.pop %v668
        %v670 = vsel %vm522, %v667, 0.0
        %671 = vadd.xlane.f32.xlu0 %v670
        %v672 = vpop.xlane.xlu0 %671
        %v673 = vsel %vm522, %v669, 0.0
        %674 = vadd.xlane.f32.xlu0 %v673
        %v675 = vpop.xlane.xlu0 %674
        %v676 = vrcp.pop %v672
        %v677 = vrcp.pop %v675
        %v678 = vmul.f32 %v667, %v676
        %v679 = vmul.f32 %v669, %v677
        %s680 = sld [smem:[#allocation2 + $0x1]]
        %v681 = vstv %s680
        %v682 = vmul.f32 %v678, %v681
        %v683 = vmul.f32 %v679, %v681
        %v684 = vround.ne.pseudo %v682
        %v685 = vround.ne.pseudo %v683
        %v686 = vmax.f32 %v684, 0.0
        %v687 = vmax.f32 %v685, 0.0
        %v688 = vmin.f32 %v686, 255.0
        %v689 = vmin.f32 %v687, 255.0
        %s690 = sld [smem:[#allocation5 + $0x1]]
        %v691 = vstv %s690
        %v692 = vmul.f32 %v688, %v691
        %v693 = vmul.f32 %v689, %v691
        %v694 = vpack.c.bf16 %v693, %v692
        %695 = vrot.lane.b32.xlu0 %v470, 56
        %v696 = vpop.permute.xlu0 %695
        %v699 = vsel %vm522, %v694, 0
        %701 = vmatprep.subr.bf16.mxu0 0
        %702 = vmatpush1.bf16.msra.mxu0 %v696
        %703 = vmatprep.subr.bf16.mxu0 0
        %704 = vmatpush1.bf16.msra.mxu0 0
        %705 = vmatprep.subr.bf16.mxu0 0
        %706 = vmatpush1.bf16.msra.mxu0 0
        %707 = vmatprep.subr.bf16.mxu0 0
        %708 = vmatpush1.bf16.msra.mxu0 0
        %709 = vmatprep.subr.bf16.mxu0 0
        %710 = vmatpush1.bf16.msra.mxu0 0
        %711 = vmatprep.subr.bf16.mxu0 0
        %712 = vmatpush1.bf16.msra.mxu0 0
        %713 = vmatprep.subr.bf16.mxu0 0
        %714 = vmatpush1.bf16.msra.mxu0 0
        %715 = vmatprep.subr.bf16.mxu0 0
        %716 = vmatpush1.bf16.msra.mxu0 0
        %717 = vmatprep.subr.bf16.mxu0 0
        %718 = vmatpush1.bf16.msra.mxu0 0
        %719 = vmatprep.subr.bf16.mxu0 0
        %720 = vmatpush1.bf16.msra.mxu0 0
        %721 = vmatprep.subr.bf16.mxu0 0
        %722 = vmatpush1.bf16.msra.mxu0 0
        %723 = vmatprep.subr.bf16.mxu0 0
        %724 = vmatpush1.bf16.msra.mxu0 0
        %725 = vmatprep.subr.bf16.mxu0 0
        %726 = vmatpush1.bf16.msra.mxu0 0
        %727 = vmatprep.subr.bf16.mxu0 0
        %728 = vmatpush1.bf16.msra.mxu0 0
        %729 = vmatprep.subr.bf16.mxu0 0
        %730 = vmatpush1.bf16.msra.mxu0 0
        %731 = vmatprep.subr.bf16.mxu0 0
        %732 = vmatpush1.bf16.msra.mxu0 0
        %733 = vmatprep.mubr.bf16.mxu0 0
        %734 = vmatmul.mubr.bf16.gmra.mrb[0].mxu0 %v699
        %v735 = vpop.f32.mrb[0].mxu0
        %v736 = vadd.f32 0.0, %v735
        %v737 = vpop.f32.mrb[0].mxu0
        %v738 = vpop.f32.mrb[0].mxu0
        %v739 = vadd.f32 0.0, %v738
        %v740 = vpop.f32.mrb[0].mxu0
        %741 = vdwg.mxu0
        %742 = vrot.lane.b32.xlu0 %v470, 112
        %v743 = vpop.permute.xlu0 %742
        %744 = vrot.lane.b32.xlu0 %v470, 80
        %v745 = vpop.permute.xlu0 %744
        %v747 = vsel %vm474, %v743, 0
        %v750 = vsel %vm474, %v745, 0
        %752 = vmatprep.subr.bf16.mxu0 0
        %753 = vmatpush1.bf16.xpose.msra.mxu0 %v750
        %754 = vmatprep.subr.bf16.mxu0 0
        %755 = vmatpush1.bf16.xpose.msra.mxu0 0
        %756 = vmatprep.subr.bf16.mxu0 0
        %757 = vmatpush1.bf16.xpose.msra.mxu0 0
        %758 = vmatprep.subr.bf16.mxu0 0
        %759 = vmatpush1.bf16.xpose.msra.mxu0 0
        %760 = vmatprep.subr.bf16.mxu0 0
        %761 = vmatpush1.bf16.xpose.msra.mxu0 0
        %762 = vmatprep.subr.bf16.mxu0 0
        %763 = vmatpush1.bf16.xpose.msra.mxu0 0
        %764 = vmatprep.subr.bf16.mxu0 0
        %765 = vmatpush1.bf16.xpose.msra.mxu0 0
        %766 = vmatprep.subr.bf16.mxu0 0
        %767 = vmatpush1.bf16.xpose.msra.mxu0 0
        %768 = vmatprep.subr.bf16.mxu0 0
        %769 = vmatpush1.bf16.xpose.msra.mxu0 0
        %770 = vmatprep.subr.bf16.mxu0 0
        %771 = vmatpush1.bf16.xpose.msra.mxu0 0
        %772 = vmatprep.subr.bf16.mxu0 0
        %773 = vmatpush1.bf16.xpose.msra.mxu0 0
        %774 = vmatprep.subr.bf16.mxu0 0
        %775 = vmatpush1.bf16.xpose.msra.mxu0 0
        %776 = vmatprep.subr.bf16.mxu0 0
        %777 = vmatpush1.bf16.xpose.msra.mxu0 0
        %778 = vmatprep.subr.bf16.mxu0 0
        %779 = vmatpush1.bf16.xpose.msra.mxu0 0
        %780 = vmatprep.subr.bf16.mxu0 0
        %781 = vmatpush1.bf16.xpose.msra.mxu0 0
        %782 = vmatprep.subr.bf16.mxu0 0
        %783 = vmatpush1.bf16.xpose.msra.mxu0 0
        %784 = vmatprep.mubr.bf16.mxu0 0
        %785 = vmatmul.mubr.bf16.gmra.mrb[0].mxu0 %v747
        %v786 = vpop.f32.mrb[0].mxu0
        %v787 = vadd.f32 0.0, %v786
        %v788 = vpop.f32.mrb[0].mxu0
        %v789 = vpop.f32.mrb[0].mxu0
        %v790 = vadd.f32 0.0, %v789
        %v791 = vpop.f32.mrb[0].mxu0
        %792 = vdwg.mxu0
        %v793 = vsel %vm522, %v787, -inf
        %794 = vmax.xlane.f32.xlu0 %v793
        %v795 = vpop.xlane.xlu0 %794
        %v796 = vsel %vm522, %v790, -inf
        %797 = vmax.xlane.f32.xlu0 %v796
        %v798 = vpop.xlane.xlu0 %797
        %v799 = vsub.f32 %v787, %v795
        %v800 = vsub.f32 %v790, %v798
        %v801 = vmul.f32 %v799, 1.442695
        %v802 = vpow.pop %v801
        %v803 = vmul.f32 %v800, 1.442695
        %v804 = vpow.pop %v803
        %v805 = vsel %vm522, %v802, 0.0
        %806 = vadd.xlane.f32.xlu0 %v805
        %v807 = vpop.xlane.xlu0 %806
        %v808 = vsel %vm522, %v804, 0.0
        %809 = vadd.xlane.f32.xlu0 %v808
        %v810 = vpop.xlane.xlu0 %809
        %v811 = vrcp.pop %v807
        %v812 = vrcp.pop %v810
        %v813 = vmul.f32 %v802, %v811
        %v814 = vmul.f32 %v804, %v812
        %s815 = sld [smem:[#allocation2 + $0x2]]
        %v816 = vstv %s815
        %v817 = vmul.f32 %v813, %v816
        %v818 = vmul.f32 %v814, %v816
        %v819 = vround.ne.pseudo %v817
        %v820 = vround.ne.pseudo %v818
        %v821 = vmax.f32 %v819, 0.0
        %v822 = vmax.f32 %v820, 0.0
        %v823 = vmin.f32 %v821, 255.0
        %v824 = vmin.f32 %v822, 255.0
        %s825 = sld [smem:[#allocation5 + $0x2]]
        %v826 = vstv %s825
        %v827 = vmul.f32 %v823, %v826
        %v828 = vmul.f32 %v824, %v826
        %v829 = vpack.c.bf16 %v828, %v827
        %830 = vrot.lane.b32.xlu0 %v470, 48
        %v831 = vpop.permute.xlu0 %830
        %v834 = vsel %vm522, %v829, 0
        %836 = vmatprep.subr.bf16.mxu0 0
        %837 = vmatpush1.bf16.msra.mxu0 %v831
        %838 = vmatprep.subr.bf16.mxu0 0
        %839 = vmatpush1.bf16.msra.mxu0 0
        %840 = vmatprep.subr.bf16.mxu0 0
        %841 = vmatpush1.bf16.msra.mxu0 0
        %842 = vmatprep.subr.bf16.mxu0 0
        %843 = vmatpush1.bf16.msra.mxu0 0
        %844 = vmatprep.subr.bf16.mxu0 0
        %845 = vmatpush1.bf16.msra.mxu0 0
        %846 = vmatprep.subr.bf16.mxu0 0
        %847 = vmatpush1.bf16.msra.mxu0 0
        %848 = vmatprep.subr.bf16.mxu0 0
        %849 = vmatpush1.bf16.msra.mxu0 0
        %850 = vmatprep.subr.bf16.mxu0 0
        %851 = vmatpush1.bf16.msra.mxu0 0
        %852 = vmatprep.subr.bf16.mxu0 0
        %853 = vmatpush1.bf16.msra.mxu0 0
        %854 = vmatprep.subr.bf16.mxu0 0
        %855 = vmatpush1.bf16.msra.mxu0 0
        %856 = vmatprep.subr.bf16.mxu0 0
        %857 = vmatpush1.bf16.msra.mxu0 0
        %858 = vmatprep.subr.bf16.mxu0 0
        %859 = vmatpush1.bf16.msra.mxu0 0
        %860 = vmatprep.subr.bf16.mxu0 0
        %861 = vmatpush1.bf16.msra.mxu0 0
        %862 = vmatprep.subr.bf16.mxu0 0
        %863 = vmatpush1.bf16.msra.mxu0 0
        %864 = vmatprep.subr.bf16.mxu0 0
        %865 = vmatpush1.bf16.msra.mxu0 0
        %866 = vmatprep.subr.bf16.mxu0 0
        %867 = vmatpush1.bf16.msra.mxu0 0
        %868 = vmatprep.mubr.bf16.mxu0 0
        %869 = vmatmul.mubr.bf16.gmra.mrb[0].mxu0 %v834
        %v870 = vpop.f32.mrb[0].mxu0
        %v871 = vadd.f32 0.0, %v870
        %v872 = vpop.f32.mrb[0].mxu0
        %v873 = vpop.f32.mrb[0].mxu0
        %v874 = vadd.f32 0.0, %v873
        %v875 = vpop.f32.mrb[0].mxu0
        %876 = vdwg.mxu0
        %877 = vrot.lane.b32.xlu0 %v470, 104
        %v878 = vpop.permute.xlu0 %877
        %879 = vrot.lane.b32.xlu0 %v470, 72
        %v880 = vpop.permute.xlu0 %879
        %v882 = vsel %vm474, %v878, 0
        %v885 = vsel %vm474, %v880, 0
        %887 = vmatprep.subr.bf16.mxu0 0
        %888 = vmatpush1.bf16.xpose.msra.mxu0 %v885
        %889 = vmatprep.subr.bf16.mxu0 0
        %890 = vmatpush1.bf16.xpose.msra.mxu0 0
        %891 = vmatprep.subr.bf16.mxu0 0
        %892 = vmatpush1.bf16.xpose.msra.mxu0 0
        %893 = vmatprep.subr.bf16.mxu0 0
        %894 = vmatpush1.bf16.xpose.msra.mxu0 0
        %895 = vmatprep.subr.bf16.mxu0 0
        %896 = vmatpush1.bf16.xpose.msra.mxu0 0
        %897 = vmatprep.subr.bf16.mxu0 0
        %898 = vmatpush1.bf16.xpose.msra.mxu0 0
        %899 = vmatprep.subr.bf16.mxu0 0
        %900 = vmatpush1.bf16.xpose.msra.mxu0 0
        %901 = vmatprep.subr.bf16.mxu0 0
        %902 = vmatpush1.bf16.xpose.msra.mxu0 0
        %903 = vmatprep.subr.bf16.mxu0 0
        %904 = vmatpush1.bf16.xpose.msra.mxu0 0
        %905 = vmatprep.subr.bf16.mxu0 0
        %906 = vmatpush1.bf16.xpose.msra.mxu0 0
        %907 = vmatprep.subr.bf16.mxu0 0
        %908 = vmatpush1.bf16.xpose.msra.mxu0 0
        %909 = vmatprep.subr.bf16.mxu0 0
        %910 = vmatpush1.bf16.xpose.msra.mxu0 0
        %911 = vmatprep.subr.bf16.mxu0 0
        %912 = vmatpush1.bf16.xpose.msra.mxu0 0
        %913 = vmatprep.subr.bf16.mxu0 0
        %914 = vmatpush1.bf16.xpose.msra.mxu0 0
        %915 = vmatprep.subr.bf16.mxu0 0
        %916 = vmatpush1.bf16.xpose.msra.mxu0 0
        %917 = vmatprep.subr.bf16.mxu0 0
        %918 = vmatpush1.bf16.xpose.msra.mxu0 0
        %919 = vmatprep.mubr.bf16.mxu0 0
        %920 = vmatmul.mubr.bf16.gmra.mrb[0].mxu0 %v882
        %v921 = vpop.f32.mrb[0].mxu0
        %v922 = vadd.f32 0.0, %v921
        %v923 = vpop.f32.mrb[0].mxu0
        %v924 = vpop.f32.mrb[0].mxu0
        %v925 = vadd.f32 0.0, %v924
        %v926 = vpop.f32.mrb[0].mxu0
        %927 = vdwg.mxu0
        %v928 = vsel %vm522, %v922, -inf
        %929 = vmax.xlane.f32.xlu0 %v928
        %v930 = vpop.xlane.xlu0 %929
        %v931 = vsel %vm522, %v925, -inf
        %932 = vmax.xlane.f32.xlu0 %v931
        %v933 = vpop.xlane.xlu0 %932
        %v934 = vsub.f32 %v922, %v930
        %v935 = vsub.f32 %v925, %v933
        %v936 = vmul.f32 %v934, 1.442695
        %v937 = vpow.pop %v936
        %v938 = vmul.f32 %v935, 1.442695
        %v939 = vpow.pop %v938
        %v940 = vsel %vm522, %v937, 0.0
        %941 = vadd.xlane.f32.xlu0 %v940
        %v942 = vpop.xlane.xlu0 %941
        %v943 = vsel %vm522, %v939, 0.0
        %944 = vadd.xlane.f32.xlu0 %v943
        %v945 = vpop.xlane.xlu0 %944
        %v946 = vrcp.pop %v942
        %v947 = vrcp.pop %v945
        %v948 = vmul.f32 %v937, %v946
        %v949 = vmul.f32 %v939, %v947
        %s950 = sld [smem:[#allocation2 + $0x3]]
        %v951 = vstv %s950
        %v952 = vmul.f32 %v948, %v951
        %v953 = vmul.f32 %v949, %v951
        %v954 = vround.ne.pseudo %v952
        %v955 = vround.ne.pseudo %v953
        %v956 = vmax.f32 %v954, 0.0
        %v957 = vmax.f32 %v955, 0.0
        %v958 = vmin.f32 %v956, 255.0
        %v959 = vmin.f32 %v957, 255.0
        %s960 = sld [smem:[#allocation5 + $0x3]]
        %v961 = vstv %s960
        %v962 = vmul.f32 %v958, %v961
        %v963 = vmul.f32 %v959, %v961
        %v964 = vpack.c.bf16 %v963, %v962
        %965 = vrot.lane.b32.xlu0 %v470, 40
        %v966 = vpop.permute.xlu0 %965
        %v969 = vsel %vm522, %v964, 0
        %971 = vmatprep.subr.bf16.mxu0 0
        %972 = vmatpush1.bf16.msra.mxu0 %v966
        %973 = vmatprep.subr.bf16.mxu0 0
        %974 = vmatpush1.bf16.msra.mxu0 0
        %975 = vmatprep.subr.bf16.mxu0 0
        %976 = vmatpush1.bf16.msra.mxu0 0
        %977 = vmatprep.subr.bf16.mxu0 0
        %978 = vmatpush1.bf16.msra.mxu0 0
        %979 = vmatprep.subr.bf16.mxu0 0
        %980 = vmatpush1.bf16.msra.mxu0 0
        %981 = vmatprep.subr.bf16.mxu0 0
        %982 = vmatpush1.bf16.msra.mxu0 0
        %983 = vmatprep.subr.bf16.mxu0 0
        %984 = vmatpush1.bf16.msra.mxu0 0
        %985 = vmatprep.subr.bf16.mxu0 0
        %986 = vmatpush1.bf16.msra.mxu0 0
        %987 = vmatprep.subr.bf16.mxu0 0
        %988 = vmatpush1.bf16.msra.mxu0 0
        %989 = vmatprep.subr.bf16.mxu0 0
        %990 = vmatpush1.bf16.msra.mxu0 0
        %991 = vmatprep.subr.bf16.mxu0 0
        %992 = vmatpush1.bf16.msra.mxu0 0
        %993 = vmatprep.subr.bf16.mxu0 0
        %994 = vmatpush1.bf16.msra.mxu0 0
        %995 = vmatprep.subr.bf16.mxu0 0
        %996 = vmatpush1.bf16.msra.mxu0 0
        %997 = vmatprep.subr.bf16.mxu0 0
        %998 = vmatpush1.bf16.msra.mxu0 0
        %999 = vmatprep.subr.bf16.mxu0 0
        %1000 = vmatpush1.bf16.msra.mxu0 0
        %1001 = vmatprep.subr.bf16.mxu0 0
        %1002 = vmatpush1.bf16.msra.mxu0 0
        %1003 = vmatprep.mubr.bf16.mxu0 0
        %1004 = vmatmul.mubr.bf16.gmra.mrb[0].mxu0 %v969
        %v1005 = vpop.f32.mrb[0].mxu0
        %v1006 = vadd.f32 0.0, %v1005
        %v1007 = vpop.f32.mrb[0].mxu0
        %v1008 = vpop.f32.mrb[0].mxu0
        %v1009 = vadd.f32 0.0, %v1008
        %v1010 = vpop.f32.mrb[0].mxu0
        %1011 = vdwg.mxu0
        %1014 = vrot.lane.b32.xlu0 %v736, 8
        %v1015 = vpop.permute.xlu0 %1014
        %1016 = vrot.lane.b32.xlu0 %v739, 8
        %v1017 = vpop.permute.xlu0 %1016
        %1022 = vrot.lane.b32.xlu0 %v871, 16
        %v1023 = vpop.permute.xlu0 %1022
        %1024 = vrot.lane.b32.xlu0 %v874, 16
        %v1025 = vpop.permute.xlu0 %1024
        %1030 = vrot.lane.b32.xlu0 %v1006, 24
        %v1031 = vpop.permute.xlu0 %1030
        %1032 = vrot.lane.b32.xlu0 %v1009, 24
        %v1033 = vpop.permute.xlu0 %1032
        %v1036 = vsel %vm474, %v601, %v1015
        %v1037 = vsel %vm474, %v604, %v1017
        %v1038 = vsel %vm522, %v1036, %v1023
        %v1039 = vsel %vm522, %v1037, %v1025
        %vm1040 = vcmask 195584
        %v1041 = vsel %vm1040, %v1038, %v1031
        %v1042 = vsel %vm1040, %v1039, %v1033
        %v1043 = vpack.c.bf16 %v1042, %v1041
        %v1044 = vld [vmem:[%s2] sm:$0xf]
        %v1045 = vld [vmem:[%s2 + $0x4] sm:$0xf]
        %v1046 = vld [vmem:[%s2 + $0x8] sm:$0xf]
        %v1047 = vld [vmem:[%s2 + $0xc] sm:$0xf]
        %v1048 = vld [vmem:[%s3] sm:$0x1]
        %v1050 = vlaneseq
        %v1051 = vshrl.u32 %v1050, 7
        %v1052 = vsub.s32 0, %v1051
        %v1053 = vrot.slane %v1048, %v1052
        %v1059 = vunpack.c.l.b16 %v1044
        %v1060 = vunpack.c.l.b16 %v1045
        %v1061 = vunpack.c.l.b16 %v1046
        %v1062 = vunpack.c.l.b16 %v1047
        %v1063 = vpack.c.b16 %v1060, %v1059
        %v1064 = vpack.c.b16 %v1062, %v1061
        %vm1067 = vcmask 261120
        %v1069 = vsel %vm1067, %v1043, 0
        %1071 = vmatprep.subr.bf16.mxu0 0
        %1072 = vmatpush1.bf16.msra.mxu0 %v1063
        %1073 = vmatprep.subr.bf16.mxu0 0
        %1074 = vmatpush1.bf16.msra.mxu0 %v1064
        %1075 = vmatprep.subr.bf16.mxu0 0
        %1076 = vmatpush1.bf16.msra.mxu0 0
        %1077 = vmatprep.subr.bf16.mxu0 0
        %1078 = vmatpush1.bf16.msra.mxu0 0
        %1079 = vmatprep.subr.bf16.mxu0 0
        %1080 = vmatpush1.bf16.msra.mxu0 0
        %1081 = vmatprep.subr.bf16.mxu0 0
        %1082 = vmatpush1.bf16.msra.mxu0 0
        %1083 = vmatprep.subr.bf16.mxu0 0
        %1084 = vmatpush1.bf16.msra.mxu0 0
        %1085 = vmatprep.subr.bf16.mxu0 0
        %1086 = vmatpush1.bf16.msra.mxu0 0
        %1087 = vmatprep.subr.bf16.mxu0 0
        %1088 = vmatpush1.bf16.msra.mxu0 0
        %1089 = vmatprep.subr.bf16.mxu0 0
        %1090 = vmatpush1.bf16.msra.mxu0 0
        %1091 = vmatprep.subr.bf16.mxu0 0
        %1092 = vmatpush1.bf16.msra.mxu0 0
        %1093 = vmatprep.subr.bf16.mxu0 0
        %1094 = vmatpush1.bf16.msra.mxu0 0
        %1095 = vmatprep.subr.bf16.mxu0 0
        %1096 = vmatpush1.bf16.msra.mxu0 0
        %1097 = vmatprep.subr.bf16.mxu0 0
        %1098 = vmatpush1.bf16.msra.mxu0 0
        %1099 = vmatprep.subr.bf16.mxu0 0
        %1100 = vmatpush1.bf16.msra.mxu0 0
        %1101 = vmatprep.subr.bf16.mxu0 0
        %1102 = vmatpush1.bf16.msra.mxu0 0
        %1103 = vmatprep.mubr.bf16.mxu0 0
        %1104 = vmatmul.mubr.bf16.gmra.mrb[0].mxu0 %v1069
        %v1105 = vpop.f32.mrb[0].mxu0
        %v1106 = vadd.f32 %v1053, %v1105
        %v1107 = vpop.f32.mrb[0].mxu0
        %v1108 = vpop.f32.mrb[0].mxu0
        %v1109 = vadd.f32 %v1053, %v1108
        %v1110 = vpop.f32.mrb[0].mxu0
        %1111 = vdwg.mxu0
        %1112 = vst.msk [vmem:[%s352] sm:$0xff] %vm401, %v1106
        %1113 = vst.msk [vmem:[%s352 + $0x8] sm:$0xff] %vm401, %v1109
        %s1114 = sand.u32 %s227, 1
        %s1115 = scalar_lea.sflag [#allocation3], %s1114
        %s1116 = sand.u32 %s227, 1
        %s1117 = smul.addr %s1116, 16
        %s1118 = scalar_lea.vmem [#allocation7], %s1117
        // Predicated region
        $region65: #{quantized_times_attention3d.1} parent=55 // pred_check
          %p1119 = pneg %p237
        $region66: #{quantized_times_attention3d.1} parent=55 // pred_check_branch
          %1121 = sbr.rel (%p1119) target = $region68
        $region67: #{quantized_times_attention3d.1} parent=55 // pred_region
          %s1123 = ssub.s32 256, 256
          %1124 = vsyncadd %s1115, %s1123
          %s1125 = smul.addr %s25, 2
          %s1126 = smul.addr %s1125, 128
          %s1127 = scalar_lea.hbm %s9, %s1126
          %s1128 = sshll.u32 %s1118, 4
          %s1129 = int_to_ptr.vmem [resolvable:$true] %s1128
          %1134 = dma.vmem_to_hbm [thread:$0]  %s1129, 256, %s1127, %s1115, 128, 128, 8
        $region68: #{quantized_times_attention3d.1} parent=55 // pred_fallthru
          _
      $region56: #{quantized_times_attention3d.1} parent=5 // pred_fallthru
        _
      %p1135 = scmp.le.s32.totalorder 2, %s20
      // Predicated region
      $region69: #{quantized_times_attention3d.1} parent=5 // pred_check
        %p1136 = pneg %p1135
      $region70: #{quantized_times_attention3d.1} parent=5 // pred_check_branch
        %1138 = sbr.rel (%p1136) target = $region72
      $region71: #{quantized_times_attention3d.1} parent=5 // pred_region
        %s1139 = ssub.s32 %s20, 2
        // Predicated region
        $region73: #{quantized_times_attention3d.1} parent=71 // pred_check
          %p1140 = pneg %p243
        $region74: #{quantized_times_attention3d.1} parent=71 // pred_check_branch
          %1142 = sbr.rel (%p1140) target = $region76
        $region75: #{quantized_times_attention3d.1} parent=71 // pred_region
          %s1143 = sand.u32 %s228, 1
          %s1144 = scalar_lea.sflag [#allocation3], %s1143
          %s1145 = sand.u32 %s228, 1
          %s1146 = smul.addr %s1145, 16
          %s1147 = scalar_lea.vmem [#allocation7], %s1146
          %1148 = dma.done %s1144, 256
        $region76: #{quantized_times_attention3d.1} parent=71 // pred_fallthru
          _
      $region72: #{quantized_times_attention3d.1} parent=5 // pred_fallthru
        _
    $region6: #{quantized_times_attention3d.1} parent=1 // loop_footer
      %s24 = sadd.s32 1, %s20
    $region7: #{quantized_times_attention3d.1} parent=1 // loop_footer_branch
      %19 = sbr.rel target = $region3
    $region8: #{quantized_times_attention3d.1} parent=1 // loop_exit
      _
    %1149 = vsyncpa [#allocation3], 1
    %s1150 = scalar_lea.sflag [#allocation3], 1
    %1151 = vsyncpa %s1150, 1
    %1152 = vsyncpa [#allocation4], 1
    %s1153 = scalar_lea.sflag [#allocation4], 1
    %1154 = vsyncpa %s1153, 1
    %1155 = vsyncpa [#allocation6], 1

</llo_original>
